<compile_context>
chip_gen: v6e
topology: v6e:2x2x1
jax: 0.10.0
libtpu: 0.0.40
codegen_flags: <defaults>
</compile_context>

<pallas_src>
import jax
import jax.numpy as jnp
from jax.experimental import pallas as pl
from jax.experimental.pallas import tpu as pltpu


# ---------------- fused kernel -------------------------------------------------
def _autoencoder_kernel(x_ref, *refs):
    # refs layout: w0,b0, w1,b1, ..., w7,b7, enc_out, dec_out
    w_refs = refs[0:16:2]
    b_refs = refs[1:16:2]
    enc_ref = refs[16]
    dec_ref = refs[17]

    # activations kept in bf16 for the MXU; math done in f32.
    h = x_ref[...].astype(jnp.bfloat16)

    # ---- encoder: Linear->ReLU x3, final Linear (no activation) ----
    y = None
    for i in range(4):
        y = jnp.dot(h, w_refs[i][...], preferred_element_type=jnp.float32)
        y = y + b_refs[i][...]
        if i < 3:
            y = jnp.maximum(y, 0.0)
        h = y.astype(jnp.bfloat16)
    enc_ref[...] = y  # f32 encode (B_pad, 3)

    # ---- decoder: Linear->ReLU x3, final Linear + Tanh ----
    for i in range(4, 8):
        y = jnp.dot(h, w_refs[i][...], preferred_element_type=jnp.float32)
        y = y + b_refs[i][...]
        if i < 7:
            y = jnp.maximum(y, 0.0)
        else:
            y = jnp.tanh(y)
        h = y.astype(jnp.bfloat16)
    dec_ref[...] = y  # f32 decode (B_pad, 896-padded)


# ---------------- parameter construction (deterministic, PyTorch-style init) ---
IN_DIM = 28 * 28          # 784
IN_DIM_PAD = 896          # 7 * 128 (lane-dense padding)
ENCODER_DIMS = [(IN_DIM, 128), (128, 64), (64, 12), (12, 3)]
DECODER_DIMS = [(3, 12), (12, 64), (64, 128), (128, IN_DIM)]
B_PAD = 8                 # f32 sublane tile


def init_params(key):
    """Weights stored transposed (in, out) in bf16; biases f32 (1, out).

    The first-layer input rows (784->896) and last-layer output cols (784->896)
    are zero-padded for lane-dense layout; padding is mathematically inert.
    """
    params = {"encoder": [], "decoder": []}
    all_dims = [("encoder", d) for d in ENCODER_DIMS] + [("decoder", d) for d in DECODER_DIMS]
    for layer_idx, (name, (fin, fout)) in enumerate(all_dims):
        key, kw, kb = jax.random.split(key, 3)
        bound = 1.0 / jnp.sqrt(float(fin))
        # PyTorch nn.Linear stores W as (out, in); we keep transposed (in, out).
        w_t = jax.random.uniform(kw, (fin, fout), jnp.float32, -bound, bound)
        b = jax.random.uniform(kb, (1, fout), jnp.float32, -bound, bound)

        fin_pad = IN_DIM_PAD if fin == IN_DIM else fin
        fout_pad = IN_DIM_PAD if fout == IN_DIM else fout
        if (fin_pad, fout_pad) != (fin, fout):
            w_t = jnp.zeros((fin_pad, fout_pad), jnp.float32).at[:fin, :fout].set(w_t)
            b = jnp.zeros((1, fout_pad), jnp.float32).at[:, :fout].set(b)

        params[name].append((w_t.astype(jnp.bfloat16), b))
    return params


# ---------------- wrapper -------------------------------------------------------
def autoencoder_forward(x, params):
    """x: [B, 784] f32 -> (encode [B, 3], decode [B, 784]), both f32."""
    B, F = x.shape
    assert F == IN_DIM

    # Zero-pad batch -> 8 rows and features -> 896 lanes (dense vreg tiles).
    x_p = jnp.zeros((B_PAD, IN_DIM_PAD), jnp.float32).at[:B, :F].set(x)

    flat_inputs = [x_p]
    for w_t, b in params["encoder"] + params["decoder"]:
        flat_inputs.append(w_t)
        flat_inputs.append(b)

    enc_dim = ENCODER_DIMS[-1][1]          # 3
    dec_dim_pad = IN_DIM_PAD               # 896 (lane-dense output)

    enc_p, dec_p = pl.pallas_call(
        _autoencoder_kernel,
        out_shape=(
            jax.ShapeDtypeStruct((B_PAD, enc_dim), jnp.float32),
            jax.ShapeDtypeStruct((B_PAD, dec_dim_pad), jnp.float32),
        ),
        in_specs=[pl.BlockSpec(memory_space=pltpu.VMEM)] * len(flat_inputs),
        out_specs=(
            pl.BlockSpec(memory_space=pltpu.VMEM),
            pl.BlockSpec(memory_space=pltpu.VMEM),
        ),
        compiler_params=pltpu.CompilerParams(
            vmem_limit_bytes=32 * 1024 * 1024,  # guardrail; footprint is ~1 MiB
        ),
    )(*flat_inputs)

    encode = enc_p[:B, :enc_dim]
    decode = dec_p[:B, :IN_DIM]
    return encode, decode


if __name__ == "__main__":
    key = jax.random.PRNGKey(0)
    kx, kp = jax.random.split(key)
    B = 2
    x = jax.random.normal(kx, (B, IN_DIM), jnp.float32)
    params = init_params(kp)

    fwd = jax.jit(autoencoder_forward)
    encode, decode = fwd(x, params)
    jax.block_until_ready((encode, decode))

    assert encode.shape == (B, 3)
    assert decode.shape == (B, IN_DIM)
    assert bool(jnp.all(jnp.abs(decode) <= 1.0))  # tanh range

    print("KERNEL_OK")
</pallas_src>

<mosaic_0001>
module attributes {stable_mosaic.version = 11 : i64} {
  func.func @_autoencoder_kernel(%arg0: memref<8x896xf32, #tpu.memory_space<vmem>>, %arg1: memref<896x128xbf16, #tpu.memory_space<vmem>>, %arg2: memref<1x128xf32, #tpu.memory_space<vmem>>, %arg3: memref<128x64xbf16, #tpu.memory_space<vmem>>, %arg4: memref<1x64xf32, #tpu.memory_space<vmem>>, %arg5: memref<64x12xbf16, #tpu.memory_space<vmem>>, %arg6: memref<1x12xf32, #tpu.memory_space<vmem>>, %arg7: memref<12x3xbf16, #tpu.memory_space<vmem>>, %arg8: memref<1x3xf32, #tpu.memory_space<vmem>>, %arg9: memref<3x12xbf16, #tpu.memory_space<vmem>>, %arg10: memref<1x12xf32, #tpu.memory_space<vmem>>, %arg11: memref<12x64xbf16, #tpu.memory_space<vmem>>, %arg12: memref<1x64xf32, #tpu.memory_space<vmem>>, %arg13: memref<64x128xbf16, #tpu.memory_space<vmem>>, %arg14: memref<1x128xf32, #tpu.memory_space<vmem>>, %arg15: memref<128x896xbf16, #tpu.memory_space<vmem>>, %arg16: memref<1x896xf32, #tpu.memory_space<vmem>>, %arg17: memref<8x3xf32, #tpu.memory_space<vmem>>, %arg18: memref<8x896xf32, #tpu.memory_space<vmem>>) attributes {dimension_semantics = [], scalar_prefetch = 0 : i64, scratch_operands = 0 : i64, tpu.core_type = #tpu.core_type<tc>} {
    %c0 = arith.constant 0 : index
    %c0_0 = arith.constant 0 : index
    %0 = vector.load %arg0[%c0, %c0_0] : memref<8x896xf32, #tpu.memory_space<vmem>>, vector<8x896xf32>
    %1 = arith.truncf %0 : vector<8x896xf32> to vector<8x896xbf16>
    %c0_1 = arith.constant 0 : index
    %c0_2 = arith.constant 0 : index
    %2 = vector.load %arg1[%c0_1, %c0_2] : memref<896x128xbf16, #tpu.memory_space<vmem>>, vector<896x128xbf16>
    %cst = arith.constant dense<0.000000e+00> : vector<8x128xf32>
    %3 = tpu.matmul %1, %2, %cst {dimension_numbers = #tpu.dot_dimension_numbers<[1], [0], [0], [1], [0, 0, 1, 1], [], []>} : vector<8x896xbf16>, vector<896x128xbf16>, vector<8x128xf32> -> vector<8x128xf32>
    %c0_3 = arith.constant 0 : index
    %c0_4 = arith.constant 0 : index
    %4 = vector.load %arg2[%c0_3, %c0_4] : memref<1x128xf32, #tpu.memory_space<vmem>>, vector<1x128xf32>
    %5 = vector.broadcast %4 : vector<1x128xf32> to vector<8x128xf32>
    %6 = arith.addf %3, %5 : vector<8x128xf32>
    %cst_5 = arith.constant 0.000000e+00 : f32
    %7 = vector.broadcast %cst_5 : f32 to vector<8x128xf32>
    %8 = arith.maximumf %6, %7 : vector<8x128xf32>
    %9 = arith.truncf %8 : vector<8x128xf32> to vector<8x128xbf16>
    %c0_6 = arith.constant 0 : index
    %c0_7 = arith.constant 0 : index
    %10 = vector.load %arg3[%c0_6, %c0_7] : memref<128x64xbf16, #tpu.memory_space<vmem>>, vector<128x64xbf16>
    %cst_8 = arith.constant dense<0.000000e+00> : vector<8x64xf32>
    %11 = tpu.matmul %9, %10, %cst_8 {dimension_numbers = #tpu.dot_dimension_numbers<[1], [0], [0], [1], [0, 0, 1, 1], [], []>} : vector<8x128xbf16>, vector<128x64xbf16>, vector<8x64xf32> -> vector<8x64xf32>
    %c0_9 = arith.constant 0 : index
    %c0_10 = arith.constant 0 : index
    %12 = vector.load %arg4[%c0_9, %c0_10] : memref<1x64xf32, #tpu.memory_space<vmem>>, vector<1x64xf32>
    %13 = vector.broadcast %12 : vector<1x64xf32> to vector<8x64xf32>
    %14 = arith.addf %11, %13 : vector<8x64xf32>
    %cst_11 = arith.constant 0.000000e+00 : f32
    %15 = vector.broadcast %cst_11 : f32 to vector<8x64xf32>
    %16 = arith.maximumf %14, %15 : vector<8x64xf32>
    %17 = arith.truncf %16 : vector<8x64xf32> to vector<8x64xbf16>
    %c0_12 = arith.constant 0 : index
    %c0_13 = arith.constant 0 : index
    %18 = vector.load %arg5[%c0_12, %c0_13] : memref<64x12xbf16, #tpu.memory_space<vmem>>, vector<64x12xbf16>
    %cst_14 = arith.constant dense<0.000000e+00> : vector<8x12xf32>
    %19 = tpu.matmul %17, %18, %cst_14 {dimension_numbers = #tpu.dot_dimension_numbers<[1], [0], [0], [1], [0, 0, 1, 1], [], []>} : vector<8x64xbf16>, vector<64x12xbf16>, vector<8x12xf32> -> vector<8x12xf32>
    %c0_15 = arith.constant 0 : index
    %c0_16 = arith.constant 0 : index
    %20 = vector.load %arg6[%c0_15, %c0_16] : memref<1x12xf32, #tpu.memory_space<vmem>>, vector<1x12xf32>
    %21 = vector.broadcast %20 : vector<1x12xf32> to vector<8x12xf32>
    %22 = arith.addf %19, %21 : vector<8x12xf32>
    %cst_17 = arith.constant 0.000000e+00 : f32
    %23 = vector.broadcast %cst_17 : f32 to vector<8x12xf32>
    %24 = arith.maximumf %22, %23 : vector<8x12xf32>
    %25 = arith.truncf %24 : vector<8x12xf32> to vector<8x12xbf16>
    %c0_18 = arith.constant 0 : index
    %c0_19 = arith.constant 0 : index
    %26 = vector.load %arg7[%c0_18, %c0_19] : memref<12x3xbf16, #tpu.memory_space<vmem>>, vector<12x3xbf16>
    %cst_20 = arith.constant dense<0.000000e+00> : vector<8x3xf32>
    %27 = tpu.matmul %25, %26, %cst_20 {dimension_numbers = #tpu.dot_dimension_numbers<[1], [0], [0], [1], [0, 0, 1, 1], [], []>} : vector<8x12xbf16>, vector<12x3xbf16>, vector<8x3xf32> -> vector<8x3xf32>
    %c0_21 = arith.constant 0 : index
    %c0_22 = arith.constant 0 : index
    %28 = vector.load %arg8[%c0_21, %c0_22] : memref<1x3xf32, #tpu.memory_space<vmem>>, vector<1x3xf32>
    %29 = vector.broadcast %28 : vector<1x3xf32> to vector<8x3xf32>
    %30 = arith.addf %27, %29 : vector<8x3xf32>
    %31 = arith.truncf %30 : vector<8x3xf32> to vector<8x3xbf16>
    %c0_23 = arith.constant 0 : index
    %c0_24 = arith.constant 0 : index
    %32 = vector.load %arg17[%c0_23, %c0_24] : memref<8x3xf32, #tpu.memory_space<vmem>>, vector<8x3xf32>
    tpu.vector_store %arg17[%c0_23, %c0_24], %30 {strides = array<i32>} : memref<8x3xf32, #tpu.memory_space<vmem>>, vector<8x3xf32>,
    %c0_25 = arith.constant 0 : index
    %c0_26 = arith.constant 0 : index
    %33 = vector.load %arg9[%c0_25, %c0_26] : memref<3x12xbf16, #tpu.memory_space<vmem>>, vector<3x12xbf16>
    %cst_27 = arith.constant dense<0.000000e+00> : vector<8x12xf32>
    %34 = tpu.matmul %31, %33, %cst_27 {dimension_numbers = #tpu.dot_dimension_numbers<[1], [0], [0], [1], [0, 0, 1, 1], [], []>} : vector<8x3xbf16>, vector<3x12xbf16>, vector<8x12xf32> -> vector<8x12xf32>
    %c0_28 = arith.constant 0 : index
    %c0_29 = arith.constant 0 : index
    %35 = vector.load %arg10[%c0_28, %c0_29] : memref<1x12xf32, #tpu.memory_space<vmem>>, vector<1x12xf32>
    %36 = vector.broadcast %35 : vector<1x12xf32> to vector<8x12xf32>
    %37 = arith.addf %34, %36 : vector<8x12xf32>
    %cst_30 = arith.constant 0.000000e+00 : f32
    %38 = vector.broadcast %cst_30 : f32 to vector<8x12xf32>
    %39 = arith.maximumf %37, %38 : vector<8x12xf32>
    %40 = arith.truncf %39 : vector<8x12xf32> to vector<8x12xbf16>
    %c0_31 = arith.constant 0 : index
    %c0_32 = arith.constant 0 : index
    %41 = vector.load %arg11[%c0_31, %c0_32] : memref<12x64xbf16, #tpu.memory_space<vmem>>, vector<12x64xbf16>
    %cst_33 = arith.constant dense<0.000000e+00> : vector<8x64xf32>
    %42 = tpu.matmul %40, %41, %cst_33 {dimension_numbers = #tpu.dot_dimension_numbers<[1], [0], [0], [1], [0, 0, 1, 1], [], []>} : vector<8x12xbf16>, vector<12x64xbf16>, vector<8x64xf32> -> vector<8x64xf32>
    %c0_34 = arith.constant 0 : index
    %c0_35 = arith.constant 0 : index
    %43 = vector.load %arg12[%c0_34, %c0_35] : memref<1x64xf32, #tpu.memory_space<vmem>>, vector<1x64xf32>
    %44 = vector.broadcast %43 : vector<1x64xf32> to vector<8x64xf32>
    %45 = arith.addf %42, %44 : vector<8x64xf32>
    %cst_36 = arith.constant 0.000000e+00 : f32
    %46 = vector.broadcast %cst_36 : f32 to vector<8x64xf32>
    %47 = arith.maximumf %45, %46 : vector<8x64xf32>
    %48 = arith.truncf %47 : vector<8x64xf32> to vector<8x64xbf16>
    %c0_37 = arith.constant 0 : index
    %c0_38 = arith.constant 0 : index
    %49 = vector.load %arg13[%c0_37, %c0_38] : memref<64x128xbf16, #tpu.memory_space<vmem>>, vector<64x128xbf16>
    %cst_39 = arith.constant dense<0.000000e+00> : vector<8x128xf32>
    %50 = tpu.matmul %48, %49, %cst_39 {dimension_numbers = #tpu.dot_dimension_numbers<[1], [0], [0], [1], [0, 0, 1, 1], [], []>} : vector<8x64xbf16>, vector<64x128xbf16>, vector<8x128xf32> -> vector<8x128xf32>
    %c0_40 = arith.constant 0 : index
    %c0_41 = arith.constant 0 : index
    %51 = vector.load %arg14[%c0_40, %c0_41] : memref<1x128xf32, #tpu.memory_space<vmem>>, vector<1x128xf32>
    %52 = vector.broadcast %51 : vector<1x128xf32> to vector<8x128xf32>
    %53 = arith.addf %50, %52 : vector<8x128xf32>
    %cst_42 = arith.constant 0.000000e+00 : f32
    %54 = vector.broadcast %cst_42 : f32 to vector<8x128xf32>
    %55 = arith.maximumf %53, %54 : vector<8x128xf32>
    %56 = arith.truncf %55 : vector<8x128xf32> to vector<8x128xbf16>
    %c0_43 = arith.constant 0 : index
    %c0_44 = arith.constant 0 : index
    %57 = vector.load %arg15[%c0_43, %c0_44] : memref<128x896xbf16, #tpu.memory_space<vmem>>, vector<128x896xbf16>
    %cst_45 = arith.constant dense<0.000000e+00> : vector<8x896xf32>
    %58 = tpu.matmul %56, %57, %cst_45 {dimension_numbers = #tpu.dot_dimension_numbers<[1], [0], [0], [1], [0, 0, 1, 1], [], []>} : vector<8x128xbf16>, vector<128x896xbf16>, vector<8x896xf32> -> vector<8x896xf32>
    %c0_46 = arith.constant 0 : index
    %c0_47 = arith.constant 0 : index
    %59 = vector.load %arg16[%c0_46, %c0_47] : memref<1x896xf32, #tpu.memory_space<vmem>>, vector<1x896xf32>
    %60 = vector.broadcast %59 : vector<1x896xf32> to vector<8x896xf32>
    %61 = arith.addf %58, %60 : vector<8x896xf32>
    %62 = math.tanh %61 : vector<8x896xf32>
    %c0_48 = arith.constant 0 : index
    %c0_49 = arith.constant 0 : index
    %63 = vector.load %arg18[%c0_48, %c0_49] : memref<8x896xf32, #tpu.memory_space<vmem>>, vector<8x896xf32>
    tpu.vector_store %arg18[%c0_48, %c0_49], %62 {strides = array<i32>} : memref<8x896xf32, #tpu.memory_space<vmem>>, vector<8x896xf32>,
    return
  }
}

</mosaic_0001>

<llo_original>
// kernel: autoencoder_forward.1
$region0: #{autoencoder_forward.1}
  #allocation0 [shape = 'u32[]', space=smem, size = 0x4, offset = 0x4, fixed_abs, tag = 'smem constant byte address 0x4 - core index']
  #allocation1 [shape = 'u32[144,128]{1,0:T(1,128)}', space=vmem, size = 0x12000, scoped, tag = 'internal scratch']
  %s0 = inlined_call_operand.vmem [shape: f32[8,896], index: 0, kind: input, shape index: {}]
  %s1 = inlined_call_operand.hbm [shape: bf16[896,128], index: 1, kind: input, shape index: {}]
  %s2 = inlined_call_operand.vmem [shape: f32[1,128], index: 2, kind: input, shape index: {}]
  %s3 = inlined_call_operand.vmem [shape: bf16[128,64], index: 3, kind: input, shape index: {}]
  %s4 = inlined_call_operand.vmem [shape: f32[1,64], index: 4, kind: input, shape index: {}]
  %s5 = inlined_call_operand.vmem [shape: bf16[64,12], index: 5, kind: input, shape index: {}]
  %s6 = inlined_call_operand.vmem [shape: f32[1,12], index: 6, kind: input, shape index: {}]
  %s7 = inlined_call_operand.vmem [shape: bf16[12,3], index: 7, kind: input, shape index: {}]
  %s8 = inlined_call_operand.vmem [shape: f32[1,3], index: 8, kind: input, shape index: {}]
  %s9 = inlined_call_operand.vmem [shape: bf16[3,12], index: 9, kind: input, shape index: {}]
  %s10 = inlined_call_operand.vmem [shape: f32[1,12], index: 10, kind: input, shape index: {}]
  %s11 = inlined_call_operand.vmem [shape: bf16[12,64], index: 11, kind: input, shape index: {}]
  %s12 = inlined_call_operand.vmem [shape: f32[1,64], index: 12, kind: input, shape index: {}]
  %s13 = inlined_call_operand.vmem [shape: bf16[64,128], index: 13, kind: input, shape index: {}]
  %s14 = inlined_call_operand.vmem [shape: f32[1,128], index: 14, kind: input, shape index: {}]
  %s15 = inlined_call_operand.hbm [shape: bf16[128,896], index: 15, kind: input, shape index: {}]
  %s16 = inlined_call_operand.vmem [shape: f32[1,896], index: 16, kind: input, shape index: {}]
  %s17 = inlined_call_operand.vmem [shape: f32[8,3], index: 17, kind: output, shape index: {0}]
  %s18 = inlined_call_operand.vmem [shape: f32[8,896], index: 18, kind: output, shape index: {1}]
  %19 = xla_tuple %s17, %s18
  %s20 = sld [smem:[#allocation0]]
  $region94: #{autoencoder_forward.1} parent=0
    _
  %s22 = ssub.s32 1, %s20
  %s23 = scalar_select 0, %s22, %s20
  $region1: #{autoencoder_forward.1} parent=0
    #allocation2 [shape = 'u8[229376]{0}', space=vmem, size = 0x38000, scoped, tag = 'input window, operand 1, single buffered']
    #allocation3 [shape = 's32[1]{0}', space=sflag, size = 0x4, scoped, tag = 'scoped memory for autoencoder_forward.1']
    #allocation4 [shape = 'u8[229376]{0}', space=vmem, size = 0x38000, scoped, tag = 'input window, operand 15, single buffered']
    #allocation5 [shape = 's32[1]{0}', space=sflag, size = 0x4, scoped, tag = 'scoped memory for autoencoder_forward.1']
    %24 = vsyncpa [#allocation3], 0
    %25 = vsyncpa [#allocation5], 0
    // Predicated region
    $region2: #{autoencoder_forward.1} parent=1 // pred_check
      _
    $region3: #{autoencoder_forward.1} parent=1 // pred_check_branch
      %27 = sbr.rel (0) target = $region5
    $region4: #{autoencoder_forward.1} parent=1 // pred_region
      _
    $region5: #{autoencoder_forward.1} parent=1 // pred_fallthru
      _
    // Predicated region
    $region6: #{autoencoder_forward.1} parent=1 // pred_check
      _
    $region7: #{autoencoder_forward.1} parent=1 // pred_check_branch
      %29 = sbr.rel (0) target = $region9
    $region8: #{autoencoder_forward.1} parent=1 // pred_region
      %s31 = ssub.s32 7168, 7168
      %32 = vsyncadd [#allocation3], %s31
      %s33 = sshll.u32 [#allocation2], 4
      %s34 = int_to_ptr.vmem [resolvable:$true] %s33
      %39 = dma.hbm_to_vmem [thread:$0]  %s1, 7168, %s34, [#allocation3], 64, 64, 4
    $region9: #{autoencoder_forward.1} parent=1 // pred_fallthru
      _
    // Predicated region
    $region10: #{autoencoder_forward.1} parent=1 // pred_check
      _
    $region11: #{autoencoder_forward.1} parent=1 // pred_check_branch
      %41 = sbr.rel (0) target = $region13
    $region12: #{autoencoder_forward.1} parent=1 // pred_region
      _
    $region13: #{autoencoder_forward.1} parent=1 // pred_fallthru
      _
    // Predicated region
    $region14: #{autoencoder_forward.1} parent=1 // pred_check
      _
    $region15: #{autoencoder_forward.1} parent=1 // pred_check_branch
      %43 = sbr.rel (0) target = $region17
    $region16: #{autoencoder_forward.1} parent=1 // pred_region
      _
    $region17: #{autoencoder_forward.1} parent=1 // pred_fallthru
      _
    // Predicated region
    $region18: #{autoencoder_forward.1} parent=1 // pred_check
      _
    $region19: #{autoencoder_forward.1} parent=1 // pred_check_branch
      %45 = sbr.rel (0) target = $region21
    $region20: #{autoencoder_forward.1} parent=1 // pred_region
      _
    $region21: #{autoencoder_forward.1} parent=1 // pred_fallthru
      _
    // Predicated region
    $region22: #{autoencoder_forward.1} parent=1 // pred_check
      _
    $region23: #{autoencoder_forward.1} parent=1 // pred_check_branch
      %47 = sbr.rel (0) target = $region25
    $region24: #{autoencoder_forward.1} parent=1 // pred_region
      _
    $region25: #{autoencoder_forward.1} parent=1 // pred_fallthru
      _
    // Predicated region
    $region26: #{autoencoder_forward.1} parent=1 // pred_check
      _
    $region27: #{autoencoder_forward.1} parent=1 // pred_check_branch
      %49 = sbr.rel (0) target = $region29
    $region28: #{autoencoder_forward.1} parent=1 // pred_region
      _
    $region29: #{autoencoder_forward.1} parent=1 // pred_fallthru
      _
    // Predicated region
    $region30: #{autoencoder_forward.1} parent=1 // pred_check
      _
    $region31: #{autoencoder_forward.1} parent=1 // pred_check_branch
      %51 = sbr.rel (0) target = $region33
    $region32: #{autoencoder_forward.1} parent=1 // pred_region
      _
    $region33: #{autoencoder_forward.1} parent=1 // pred_fallthru
      _
    // Predicated region
    $region34: #{autoencoder_forward.1} parent=1 // pred_check
      _
    $region35: #{autoencoder_forward.1} parent=1 // pred_check_branch
      %53 = sbr.rel (0) target = $region37
    $region36: #{autoencoder_forward.1} parent=1 // pred_region
      _
    $region37: #{autoencoder_forward.1} parent=1 // pred_fallthru
      _
    // Predicated region
    $region38: #{autoencoder_forward.1} parent=1 // pred_check
      _
    $region39: #{autoencoder_forward.1} parent=1 // pred_check_branch
      %55 = sbr.rel (0) target = $region41
    $region40: #{autoencoder_forward.1} parent=1 // pred_region
      _
    $region41: #{autoencoder_forward.1} parent=1 // pred_fallthru
      _
    // Predicated region
    $region42: #{autoencoder_forward.1} parent=1 // pred_check
      _
    $region43: #{autoencoder_forward.1} parent=1 // pred_check_branch
      %57 = sbr.rel (0) target = $region45
    $region44: #{autoencoder_forward.1} parent=1 // pred_region
      _
    $region45: #{autoencoder_forward.1} parent=1 // pred_fallthru
      _
    // Predicated region
    $region46: #{autoencoder_forward.1} parent=1 // pred_check
      _
    $region47: #{autoencoder_forward.1} parent=1 // pred_check_branch
      %59 = sbr.rel (0) target = $region49
    $region48: #{autoencoder_forward.1} parent=1 // pred_region
      _
    $region49: #{autoencoder_forward.1} parent=1 // pred_fallthru
      _
    // Predicated region
    $region50: #{autoencoder_forward.1} parent=1 // pred_check
      _
    $region51: #{autoencoder_forward.1} parent=1 // pred_check_branch
      %61 = sbr.rel (0) target = $region53
    $region52: #{autoencoder_forward.1} parent=1 // pred_region
      _
    $region53: #{autoencoder_forward.1} parent=1 // pred_fallthru
      _
    // Predicated region
    $region54: #{autoencoder_forward.1} parent=1 // pred_check
      _
    $region55: #{autoencoder_forward.1} parent=1 // pred_check_branch
      %63 = sbr.rel (0) target = $region57
    $region56: #{autoencoder_forward.1} parent=1 // pred_region
      _
    $region57: #{autoencoder_forward.1} parent=1 // pred_fallthru
      _
    // Predicated region
    $region58: #{autoencoder_forward.1} parent=1 // pred_check
      _
    $region59: #{autoencoder_forward.1} parent=1 // pred_check_branch
      %65 = sbr.rel (0) target = $region61
    $region60: #{autoencoder_forward.1} parent=1 // pred_region
      _
    $region61: #{autoencoder_forward.1} parent=1 // pred_fallthru
      _
    // Predicated region
    $region62: #{autoencoder_forward.1} parent=1 // pred_check
      _
    $region63: #{autoencoder_forward.1} parent=1 // pred_check_branch
      %67 = sbr.rel (0) target = $region65
    $region64: #{autoencoder_forward.1} parent=1 // pred_region
      %s69 = ssub.s32 7168, 7168
      %70 = vsyncadd [#allocation5], %s69
      %s71 = sshll.u32 [#allocation4], 4
      %s72 = int_to_ptr.vmem [resolvable:$true] %s71
      %77 = dma.hbm_to_vmem [thread:$0]  %s15, 7168, %s72, [#allocation5], 448, 448, 28
    $region65: #{autoencoder_forward.1} parent=1 // pred_fallthru
      _
    // Predicated region
    $region66: #{autoencoder_forward.1} parent=1 // pred_check
      _
    $region67: #{autoencoder_forward.1} parent=1 // pred_check_branch
      %79 = sbr.rel (0) target = $region69
    $region68: #{autoencoder_forward.1} parent=1 // pred_region
      _
    $region69: #{autoencoder_forward.1} parent=1 // pred_fallthru
      _
    // Predicated region
    $region70: #{autoencoder_forward.1} parent=1 // pred_check
      _
    $region71: #{autoencoder_forward.1} parent=1 // pred_check_branch
      %81 = sbr.rel (0) target = $region73
    $region72: #{autoencoder_forward.1} parent=1 // pred_region
      %82 = dma.done [#allocation3], 7168
    $region73: #{autoencoder_forward.1} parent=1 // pred_fallthru
      _
    // Predicated region
    $region74: #{autoencoder_forward.1} parent=1 // pred_check
      _
    $region75: #{autoencoder_forward.1} parent=1 // pred_check_branch
      %84 = sbr.rel (0) target = $region77
    $region76: #{autoencoder_forward.1} parent=1 // pred_region
      %85 = dma.done [#allocation5], 7168
    $region77: #{autoencoder_forward.1} parent=1 // pred_fallthru
      _
    %v87 = vld [vmem:[%s0] sm:$0xff]
    %v88 = vld [vmem:[%s0 + $0x8] sm:$0xff]
    %v89 = vld [vmem:[%s0 + $0x10] sm:$0xff]
    %v90 = vld [vmem:[%s0 + $0x18] sm:$0xff]
    %v91 = vld [vmem:[%s0 + $0x20] sm:$0xff]
    %v92 = vld [vmem:[%s0 + $0x28] sm:$0xff]
    %v93 = vld [vmem:[%s0 + $0x30] sm:$0xff]
    %v94 = vpack.c.bf16 %v87, %v87
    %v95 = vpack.c.bf16 %v88, %v88
    %v96 = vpack.c.bf16 %v89, %v89
    %v97 = vpack.c.bf16 %v90, %v90
    %v98 = vpack.c.bf16 %v91, %v91
    %v99 = vpack.c.bf16 %v92, %v92
    %v100 = vpack.c.bf16 %v93, %v93
    %v101 = vld [vmem:[#allocation2] sm:$0xf]
    %v102 = vld [vmem:[#allocation2 + $0x4] sm:$0xf]
    %v103 = vld [vmem:[#allocation2 + $0x8] sm:$0xf]
    %v104 = vld [vmem:[#allocation2 + $0xc] sm:$0xf]
    %v105 = vld [vmem:[#allocation2 + $0x10] sm:$0xf]
    %v106 = vld [vmem:[#allocation2 + $0x14] sm:$0xf]
    %v107 = vld [vmem:[#allocation2 + $0x18] sm:$0xf]
    %v108 = vld [vmem:[#allocation2 + $0x1c] sm:$0xf]
    %v109 = vld [vmem:[#allocation2 + $0x20] sm:$0xf]
    %v110 = vld [vmem:[#allocation2 + $0x24] sm:$0xf]
    %v111 = vld [vmem:[#allocation2 + $0x28] sm:$0xf]
    %v112 = vld [vmem:[#allocation2 + $0x2c] sm:$0xf]
    %v113 = vld [vmem:[#allocation2 + $0x30] sm:$0xf]
    %v114 = vld [vmem:[#allocation2 + $0x34] sm:$0xf]
    %v115 = vld [vmem:[#allocation2 + $0x38] sm:$0xf]
    %v116 = vld [vmem:[#allocation2 + $0x3c] sm:$0xf]
    %v117 = vld [vmem:[#allocation2 + $0x40] sm:$0xf]
    %v118 = vld [vmem:[#allocation2 + $0x44] sm:$0xf]
    %v119 = vld [vmem:[#allocation2 + $0x48] sm:$0xf]
    %v120 = vld [vmem:[#allocation2 + $0x4c] sm:$0xf]
    %v121 = vld [vmem:[#allocation2 + $0x50] sm:$0xf]
    %v122 = vld [vmem:[#allocation2 + $0x54] sm:$0xf]
    %v123 = vld [vmem:[#allocation2 + $0x58] sm:$0xf]
    %v124 = vld [vmem:[#allocation2 + $0x5c] sm:$0xf]
    %v125 = vld [vmem:[#allocation2 + $0x60] sm:$0xf]
    %v126 = vld [vmem:[#allocation2 + $0x64] sm:$0xf]
    %v127 = vld [vmem:[#allocation2 + $0x68] sm:$0xf]
    %v128 = vld [vmem:[#allocation2 + $0x6c] sm:$0xf]
    %v129 = vld [vmem:[#allocation2 + $0x70] sm:$0xf]
    %v130 = vld [vmem:[#allocation2 + $0x74] sm:$0xf]
    %v131 = vld [vmem:[#allocation2 + $0x78] sm:$0xf]
    %v132 = vld [vmem:[#allocation2 + $0x7c] sm:$0xf]
    %v133 = vld [vmem:[#allocation2 + $0x80] sm:$0xf]
    %v134 = vld [vmem:[#allocation2 + $0x84] sm:$0xf]
    %v135 = vld [vmem:[#allocation2 + $0x88] sm:$0xf]
    %v136 = vld [vmem:[#allocation2 + $0x8c] sm:$0xf]
    %v137 = vld [vmem:[#allocation2 + $0x90] sm:$0xf]
    %v138 = vld [vmem:[#allocation2 + $0x94] sm:$0xf]
    %v139 = vld [vmem:[#allocation2 + $0x98] sm:$0xf]
    %v140 = vld [vmem:[#allocation2 + $0x9c] sm:$0xf]
    %v141 = vld [vmem:[#allocation2 + $0xa0] sm:$0xf]
    %v142 = vld [vmem:[#allocation2 + $0xa4] sm:$0xf]
    %v143 = vld [vmem:[#allocation2 + $0xa8] sm:$0xf]
    %v144 = vld [vmem:[#allocation2 + $0xac] sm:$0xf]
    %v145 = vld [vmem:[#allocation2 + $0xb0] sm:$0xf]
    %v146 = vld [vmem:[#allocation2 + $0xb4] sm:$0xf]
    %v147 = vld [vmem:[#allocation2 + $0xb8] sm:$0xf]
    %v148 = vld [vmem:[#allocation2 + $0xbc] sm:$0xf]
    %v149 = vld [vmem:[#allocation2 + $0xc0] sm:$0xf]
    %v150 = vld [vmem:[#allocation2 + $0xc4] sm:$0xf]
    %v151 = vld [vmem:[#allocation2 + $0xc8] sm:$0xf]
    %v152 = vld [vmem:[#allocation2 + $0xcc] sm:$0xf]
    %v153 = vld [vmem:[#allocation2 + $0xd0] sm:$0xf]
    %v154 = vld [vmem:[#allocation2 + $0xd4] sm:$0xf]
    %v155 = vld [vmem:[#allocation2 + $0xd8] sm:$0xf]
    %v156 = vld [vmem:[#allocation2 + $0xdc] sm:$0xf]
    %v157 = vld [vmem:[#allocation2 + $0xe0] sm:$0xf]
    %v158 = vld [vmem:[#allocation2 + $0xe4] sm:$0xf]
    %v159 = vld [vmem:[#allocation2 + $0xe8] sm:$0xf]
    %v160 = vld [vmem:[#allocation2 + $0xec] sm:$0xf]
    %v161 = vld [vmem:[#allocation2 + $0xf0] sm:$0xf]
    %v162 = vld [vmem:[#allocation2 + $0xf4] sm:$0xf]
    %v163 = vld [vmem:[#allocation2 + $0xf8] sm:$0xf]
    %v164 = vld [vmem:[#allocation2 + $0xfc] sm:$0xf]
    %v165 = vld [vmem:[#allocation2 + $0x100] sm:$0xf]
    %v166 = vld [vmem:[#allocation2 + $0x104] sm:$0xf]
    %v167 = vld [vmem:[#allocation2 + $0x108] sm:$0xf]
    %v168 = vld [vmem:[#allocation2 + $0x10c] sm:$0xf]
    %v169 = vld [vmem:[#allocation2 + $0x110] sm:$0xf]
    %v170 = vld [vmem:[#allocation2 + $0x114] sm:$0xf]
    %v171 = vld [vmem:[#allocation2 + $0x118] sm:$0xf]
    %v172 = vld [vmem:[#allocation2 + $0x11c] sm:$0xf]
    %v173 = vld [vmem:[#allocation2 + $0x120] sm:$0xf]
    %v174 = vld [vmem:[#allocation2 + $0x124] sm:$0xf]
    %v175 = vld [vmem:[#allocation2 + $0x128] sm:$0xf]
    %v176 = vld [vmem:[#allocation2 + $0x12c] sm:$0xf]
    %v177 = vld [vmem:[#allocation2 + $0x130] sm:$0xf]
    %v178 = vld [vmem:[#allocation2 + $0x134] sm:$0xf]
    %v179 = vld [vmem:[#allocation2 + $0x138] sm:$0xf]
    %v180 = vld [vmem:[#allocation2 + $0x13c] sm:$0xf]
    %v181 = vld [vmem:[#allocation2 + $0x140] sm:$0xf]
    %v182 = vld [vmem:[#allocation2 + $0x144] sm:$0xf]
    %v183 = vld [vmem:[#allocation2 + $0x148] sm:$0xf]
    %v184 = vld [vmem:[#allocation2 + $0x14c] sm:$0xf]
    %v185 = vld [vmem:[#allocation2 + $0x150] sm:$0xf]
    %v186 = vld [vmem:[#allocation2 + $0x154] sm:$0xf]
    %v187 = vld [vmem:[#allocation2 + $0x158] sm:$0xf]
    %v188 = vld [vmem:[#allocation2 + $0x15c] sm:$0xf]
    %v189 = vld [vmem:[#allocation2 + $0x160] sm:$0xf]
    %v190 = vld [vmem:[#allocation2 + $0x164] sm:$0xf]
    %v191 = vld [vmem:[#allocation2 + $0x168] sm:$0xf]
    %v192 = vld [vmem:[#allocation2 + $0x16c] sm:$0xf]
    %v193 = vld [vmem:[#allocation2 + $0x170] sm:$0xf]
    %v194 = vld [vmem:[#allocation2 + $0x174] sm:$0xf]
    %v195 = vld [vmem:[#allocation2 + $0x178] sm:$0xf]
    %v196 = vld [vmem:[#allocation2 + $0x17c] sm:$0xf]
    %v197 = vld [vmem:[#allocation2 + $0x180] sm:$0xf]
    %v198 = vld [vmem:[#allocation2 + $0x184] sm:$0xf]
    %v199 = vld [vmem:[#allocation2 + $0x188] sm:$0xf]
    %v200 = vld [vmem:[#allocation2 + $0x18c] sm:$0xf]
    %v201 = vld [vmem:[#allocation2 + $0x190] sm:$0xf]
    %v202 = vld [vmem:[#allocation2 + $0x194] sm:$0xf]
    %v203 = vld [vmem:[#allocation2 + $0x198] sm:$0xf]
    %v204 = vld [vmem:[#allocation2 + $0x19c] sm:$0xf]
    %v205 = vld [vmem:[#allocation2 + $0x1a0] sm:$0xf]
    %v206 = vld [vmem:[#allocation2 + $0x1a4] sm:$0xf]
    %v207 = vld [vmem:[#allocation2 + $0x1a8] sm:$0xf]
    %v208 = vld [vmem:[#allocation2 + $0x1ac] sm:$0xf]
    %v209 = vld [vmem:[#allocation2 + $0x1b0] sm:$0xf]
    %v210 = vld [vmem:[#allocation2 + $0x1b4] sm:$0xf]
    %v211 = vld [vmem:[#allocation2 + $0x1b8] sm:$0xf]
    %v212 = vld [vmem:[#allocation2 + $0x1bc] sm:$0xf]
    %v213 = vld [vmem:[%s2] sm:$0x1]
    %v215 = vlaneseq
    %v216 = vshrl.u32 %v215, 7
    %v217 = vsub.s32 0, %v216
    %v218 = vrot.slane %v213, %v217
    %v332 = vunpack.c.l.b16 %v101
    %v333 = vunpack.c.l.b16 %v102
    %v334 = vunpack.c.l.b16 %v103
    %v335 = vunpack.c.l.b16 %v104
    %v336 = vunpack.c.l.b16 %v105
    %v337 = vunpack.c.l.b16 %v106
    %v338 = vunpack.c.l.b16 %v107
    %v339 = vunpack.c.l.b16 %v108
    %v340 = vunpack.c.l.b16 %v109
    %v341 = vunpack.c.l.b16 %v110
    %v342 = vunpack.c.l.b16 %v111
    %v343 = vunpack.c.l.b16 %v112
    %v344 = vunpack.c.l.b16 %v113
    %v345 = vunpack.c.l.b16 %v114
    %v346 = vunpack.c.l.b16 %v115
    %v347 = vunpack.c.l.b16 %v116
    %v348 = vunpack.c.l.b16 %v117
    %v349 = vunpack.c.l.b16 %v118
    %v350 = vunpack.c.l.b16 %v119
    %v351 = vunpack.c.l.b16 %v120
    %v352 = vunpack.c.l.b16 %v121
    %v353 = vunpack.c.l.b16 %v122
    %v354 = vunpack.c.l.b16 %v123
    %v355 = vunpack.c.l.b16 %v124
    %v356 = vunpack.c.l.b16 %v125
    %v357 = vunpack.c.l.b16 %v126
    %v358 = vunpack.c.l.b16 %v127
    %v359 = vunpack.c.l.b16 %v128
    %v360 = vunpack.c.l.b16 %v129
    %v361 = vunpack.c.l.b16 %v130
    %v362 = vunpack.c.l.b16 %v131
    %v363 = vunpack.c.l.b16 %v132
    %v364 = vunpack.c.l.b16 %v133
    %v365 = vunpack.c.l.b16 %v134
    %v366 = vunpack.c.l.b16 %v135
    %v367 = vunpack.c.l.b16 %v136
    %v368 = vunpack.c.l.b16 %v137
    %v369 = vunpack.c.l.b16 %v138
    %v370 = vunpack.c.l.b16 %v139
    %v371 = vunpack.c.l.b16 %v140
    %v372 = vunpack.c.l.b16 %v141
    %v373 = vunpack.c.l.b16 %v142
    %v374 = vunpack.c.l.b16 %v143
    %v375 = vunpack.c.l.b16 %v144
    %v376 = vunpack.c.l.b16 %v145
    %v377 = vunpack.c.l.b16 %v146
    %v378 = vunpack.c.l.b16 %v147
    %v379 = vunpack.c.l.b16 %v148
    %v380 = vunpack.c.l.b16 %v149
    %v381 = vunpack.c.l.b16 %v150
    %v382 = vunpack.c.l.b16 %v151
    %v383 = vunpack.c.l.b16 %v152
    %v384 = vunpack.c.l.b16 %v153
    %v385 = vunpack.c.l.b16 %v154
    %v386 = vunpack.c.l.b16 %v155
    %v387 = vunpack.c.l.b16 %v156
    %v388 = vunpack.c.l.b16 %v157
    %v389 = vunpack.c.l.b16 %v158
    %v390 = vunpack.c.l.b16 %v159
    %v391 = vunpack.c.l.b16 %v160
    %v392 = vunpack.c.l.b16 %v161
    %v393 = vunpack.c.l.b16 %v162
    %v394 = vunpack.c.l.b16 %v163
    %v395 = vunpack.c.l.b16 %v164
    %v396 = vunpack.c.l.b16 %v165
    %v397 = vunpack.c.l.b16 %v166
    %v398 = vunpack.c.l.b16 %v167
    %v399 = vunpack.c.l.b16 %v168
    %v400 = vunpack.c.l.b16 %v169
    %v401 = vunpack.c.l.b16 %v170
    %v402 = vunpack.c.l.b16 %v171
    %v403 = vunpack.c.l.b16 %v172
    %v404 = vunpack.c.l.b16 %v173
    %v405 = vunpack.c.l.b16 %v174
    %v406 = vunpack.c.l.b16 %v175
    %v407 = vunpack.c.l.b16 %v176
    %v408 = vunpack.c.l.b16 %v177
    %v409 = vunpack.c.l.b16 %v178
    %v410 = vunpack.c.l.b16 %v179
    %v411 = vunpack.c.l.b16 %v180
    %v412 = vunpack.c.l.b16 %v181
    %v413 = vunpack.c.l.b16 %v182
    %v414 = vunpack.c.l.b16 %v183
    %v415 = vunpack.c.l.b16 %v184
    %v416 = vunpack.c.l.b16 %v185
    %v417 = vunpack.c.l.b16 %v186
    %v418 = vunpack.c.l.b16 %v187
    %v419 = vunpack.c.l.b16 %v188
    %v420 = vunpack.c.l.b16 %v189
    %v421 = vunpack.c.l.b16 %v190
    %v422 = vunpack.c.l.b16 %v191
    %v423 = vunpack.c.l.b16 %v192
    %v424 = vunpack.c.l.b16 %v193
    %v425 = vunpack.c.l.b16 %v194
    %v426 = vunpack.c.l.b16 %v195
    %v427 = vunpack.c.l.b16 %v196
    %v428 = vunpack.c.l.b16 %v197
    %v429 = vunpack.c.l.b16 %v198
    %v430 = vunpack.c.l.b16 %v199
    %v431 = vunpack.c.l.b16 %v200
    %v432 = vunpack.c.l.b16 %v201
    %v433 = vunpack.c.l.b16 %v202
    %v434 = vunpack.c.l.b16 %v203
    %v435 = vunpack.c.l.b16 %v204
    %v436 = vunpack.c.l.b16 %v205
    %v437 = vunpack.c.l.b16 %v206
    %v438 = vunpack.c.l.b16 %v207
    %v439 = vunpack.c.l.b16 %v208
    %v440 = vunpack.c.l.b16 %v209
    %v441 = vunpack.c.l.b16 %v210
    %v442 = vunpack.c.l.b16 %v211
    %v443 = vunpack.c.l.b16 %v212
    %v444 = vpack.c.b16 %v333, %v332
    %v445 = vpack.c.b16 %v335, %v334
    %v446 = vpack.c.b16 %v337, %v336
    %v447 = vpack.c.b16 %v339, %v338
    %v448 = vpack.c.b16 %v341, %v340
    %v449 = vpack.c.b16 %v343, %v342
    %v450 = vpack.c.b16 %v345, %v344
    %v451 = vpack.c.b16 %v347, %v346
    %v452 = vpack.c.b16 %v349, %v348
    %v453 = vpack.c.b16 %v351, %v350
    %v454 = vpack.c.b16 %v353, %v352
    %v455 = vpack.c.b16 %v355, %v354
    %v456 = vpack.c.b16 %v357, %v356
    %v457 = vpack.c.b16 %v359, %v358
    %v458 = vpack.c.b16 %v361, %v360
    %v459 = vpack.c.b16 %v363, %v362
    %v460 = vpack.c.b16 %v365, %v364
    %v461 = vpack.c.b16 %v367, %v366
    %v462 = vpack.c.b16 %v369, %v368
    %v463 = vpack.c.b16 %v371, %v370
    %v464 = vpack.c.b16 %v373, %v372
    %v465 = vpack.c.b16 %v375, %v374
    %v466 = vpack.c.b16 %v377, %v376
    %v467 = vpack.c.b16 %v379, %v378
    %v468 = vpack.c.b16 %v381, %v380
    %v469 = vpack.c.b16 %v383, %v382
    %v470 = vpack.c.b16 %v385, %v384
    %v471 = vpack.c.b16 %v387, %v386
    %v472 = vpack.c.b16 %v389, %v388
    %v473 = vpack.c.b16 %v391, %v390
    %v474 = vpack.c.b16 %v393, %v392
    %v475 = vpack.c.b16 %v395, %v394
    %v476 = vpack.c.b16 %v397, %v396
    %v477 = vpack.c.b16 %v399, %v398
    %v478 = vpack.c.b16 %v401, %v400
    %v479 = vpack.c.b16 %v403, %v402
    %v480 = vpack.c.b16 %v405, %v404
    %v481 = vpack.c.b16 %v407, %v406
    %v482 = vpack.c.b16 %v409, %v408
    %v483 = vpack.c.b16 %v411, %v410
    %v484 = vpack.c.b16 %v413, %v412
    %v485 = vpack.c.b16 %v415, %v414
    %v486 = vpack.c.b16 %v417, %v416
    %v487 = vpack.c.b16 %v419, %v418
    %v488 = vpack.c.b16 %v421, %v420
    %v489 = vpack.c.b16 %v423, %v422
    %v490 = vpack.c.b16 %v425, %v424
    %v491 = vpack.c.b16 %v427, %v426
    %v492 = vpack.c.b16 %v429, %v428
    %v493 = vpack.c.b16 %v431, %v430
    %v494 = vpack.c.b16 %v433, %v432
    %v495 = vpack.c.b16 %v435, %v434
    %v496 = vpack.c.b16 %v437, %v436
    %v497 = vpack.c.b16 %v439, %v438
    %v498 = vpack.c.b16 %v441, %v440
    %v499 = vpack.c.b16 %v443, %v442
    %556 = vmatprep.subr.bf16.mxu0 0
    %557 = vmatpush1.bf16.msra.mxu0 %v451
    %558 = vmatprep.subr.bf16.mxu0 0
    %559 = vmatpush1.bf16.msra.mxu0 %v450
    %560 = vmatprep.subr.bf16.mxu0 0
    %561 = vmatpush1.bf16.msra.mxu0 %v449
    %562 = vmatprep.subr.bf16.mxu0 0
    %563 = vmatpush1.bf16.msra.mxu0 %v448
    %564 = vmatprep.subr.bf16.mxu0 0
    %565 = vmatpush1.bf16.msra.mxu0 %v447
    %566 = vmatprep.subr.bf16.mxu0 0
    %567 = vmatpush1.bf16.msra.mxu0 %v446
    %568 = vmatprep.subr.bf16.mxu0 0
    %569 = vmatpush1.bf16.msra.mxu0 %v445
    %570 = vmatprep.subr.bf16.mxu0 0
    %571 = vmatpush1.bf16.msra.mxu0 %v444
    %572 = vmatprep.subr.bf16.mxu0 0
    %573 = vmatpush2.bf16.msra.mxu0 %v459
    %574 = vmatprep.subr.bf16.mxu0 0
    %575 = vmatpush2.bf16.msra.mxu0 %v458
    %576 = vmatprep.subr.bf16.mxu0 0
    %577 = vmatpush2.bf16.msra.mxu0 %v457
    %578 = vmatprep.subr.bf16.mxu0 0
    %579 = vmatpush2.bf16.msra.mxu0 %v456
    %580 = vmatprep.subr.bf16.mxu0 0
    %581 = vmatpush2.bf16.msra.mxu0 %v455
    %582 = vmatprep.subr.bf16.mxu0 0
    %583 = vmatpush2.bf16.msra.mxu0 %v454
    %584 = vmatprep.subr.bf16.mxu0 0
    %585 = vmatpush2.bf16.msra.mxu0 %v453
    %586 = vmatprep.subr.bf16.mxu0 0
    %587 = vmatpush2.bf16.msra.mxu0 %v452
    %588 = vmatprep.mubr.bf16.mxu0 %v95
    %589 = vmatmul.mubr.bf16.gmra.mxu0 %v94
    %v590 = vpop.f32.mrf.mxu0
    %v591 = vadd.f32 %v218, %v590
    %v592 = vpop.f32.mrf.mxu0
    %v593 = vpop.f32.mrf.mxu0
    %v594 = vpop.f32.mrf.mxu0
    %595 = vdwg.mxu0
    %596 = vmatprep.subr.bf16.mxu0 0
    %597 = vmatpush1.bf16.msra.mxu0 %v467
    %598 = vmatprep.subr.bf16.mxu0 0
    %599 = vmatpush1.bf16.msra.mxu0 %v466
    %600 = vmatprep.subr.bf16.mxu0 0
    %601 = vmatpush1.bf16.msra.mxu0 %v465
    %602 = vmatprep.subr.bf16.mxu0 0
    %603 = vmatpush1.bf16.msra.mxu0 %v464
    %604 = vmatprep.subr.bf16.mxu0 0
    %605 = vmatpush1.bf16.msra.mxu0 %v463
    %606 = vmatprep.subr.bf16.mxu0 0
    %607 = vmatpush1.bf16.msra.mxu0 %v462
    %608 = vmatprep.subr.bf16.mxu0 0
    %609 = vmatpush1.bf16.msra.mxu0 %v461
    %610 = vmatprep.subr.bf16.mxu0 0
    %611 = vmatpush1.bf16.msra.mxu0 %v460
    %612 = vmatprep.subr.bf16.mxu0 0
    %613 = vmatpush2.bf16.msra.mxu0 %v475
    %614 = vmatprep.subr.bf16.mxu0 0
    %615 = vmatpush2.bf16.msra.mxu0 %v474
    %616 = vmatprep.subr.bf16.mxu0 0
    %617 = vmatpush2.bf16.msra.mxu0 %v473
    %618 = vmatprep.subr.bf16.mxu0 0
    %619 = vmatpush2.bf16.msra.mxu0 %v472
    %620 = vmatprep.subr.bf16.mxu0 0
    %621 = vmatpush2.bf16.msra.mxu0 %v471
    %622 = vmatprep.subr.bf16.mxu0 0
    %623 = vmatpush2.bf16.msra.mxu0 %v470
    %624 = vmatprep.subr.bf16.mxu0 0
    %625 = vmatpush2.bf16.msra.mxu0 %v469
    %626 = vmatprep.subr.bf16.mxu0 0
    %627 = vmatpush2.bf16.msra.mxu0 %v468
    %628 = vmatprep.mubr.bf16.mxu0 %v97
    %629 = vmatmul.mubr.bf16.gmra.mxu0 %v96
    %v630 = vpop.f32.mrf.mxu0
    %v631 = vadd.f32 %v591, %v630
    %v632 = vpop.f32.mrf.mxu0
    %v633 = vpop.f32.mrf.mxu0
    %v634 = vpop.f32.mrf.mxu0
    %635 = vdwg.mxu0
    %636 = vmatprep.subr.bf16.mxu0 0
    %637 = vmatpush1.bf16.msra.mxu0 %v483
    %638 = vmatprep.subr.bf16.mxu0 0
    %639 = vmatpush1.bf16.msra.mxu0 %v482
    %640 = vmatprep.subr.bf16.mxu0 0
    %641 = vmatpush1.bf16.msra.mxu0 %v481
    %642 = vmatprep.subr.bf16.mxu0 0
    %643 = vmatpush1.bf16.msra.mxu0 %v480
    %644 = vmatprep.subr.bf16.mxu0 0
    %645 = vmatpush1.bf16.msra.mxu0 %v479
    %646 = vmatprep.subr.bf16.mxu0 0
    %647 = vmatpush1.bf16.msra.mxu0 %v478
    %648 = vmatprep.subr.bf16.mxu0 0
    %649 = vmatpush1.bf16.msra.mxu0 %v477
    %650 = vmatprep.subr.bf16.mxu0 0
    %651 = vmatpush1.bf16.msra.mxu0 %v476
    %652 = vmatprep.subr.bf16.mxu0 0
    %653 = vmatpush2.bf16.msra.mxu0 %v491
    %654 = vmatprep.subr.bf16.mxu0 0
    %655 = vmatpush2.bf16.msra.mxu0 %v490
    %656 = vmatprep.subr.bf16.mxu0 0
    %657 = vmatpush2.bf16.msra.mxu0 %v489
    %658 = vmatprep.subr.bf16.mxu0 0
    %659 = vmatpush2.bf16.msra.mxu0 %v488
    %660 = vmatprep.subr.bf16.mxu0 0
    %661 = vmatpush2.bf16.msra.mxu0 %v487
    %662 = vmatprep.subr.bf16.mxu0 0
    %663 = vmatpush2.bf16.msra.mxu0 %v486
    %664 = vmatprep.subr.bf16.mxu0 0
    %665 = vmatpush2.bf16.msra.mxu0 %v485
    %666 = vmatprep.subr.bf16.mxu0 0
    %667 = vmatpush2.bf16.msra.mxu0 %v484
    %668 = vmatprep.mubr.bf16.mxu0 %v99
    %669 = vmatmul.mubr.bf16.gmra.mxu0 %v98
    %v670 = vpop.f32.mrf.mxu0
    %v671 = vadd.f32 %v631, %v670
    %v672 = vpop.f32.mrf.mxu0
    %v673 = vpop.f32.mrf.mxu0
    %v674 = vpop.f32.mrf.mxu0
    %675 = vdwg.mxu0
    %676 = vmatprep.subr.bf16.mxu0 0
    %677 = vmatpush1.bf16.msra.mxu0 %v499
    %678 = vmatprep.subr.bf16.mxu0 0
    %679 = vmatpush1.bf16.msra.mxu0 %v498
    %680 = vmatprep.subr.bf16.mxu0 0
    %681 = vmatpush1.bf16.msra.mxu0 %v497
    %682 = vmatprep.subr.bf16.mxu0 0
    %683 = vmatpush1.bf16.msra.mxu0 %v496
    %684 = vmatprep.subr.bf16.mxu0 0
    %685 = vmatpush1.bf16.msra.mxu0 %v495
    %686 = vmatprep.subr.bf16.mxu0 0
    %687 = vmatpush1.bf16.msra.mxu0 %v494
    %688 = vmatprep.subr.bf16.mxu0 0
    %689 = vmatpush1.bf16.msra.mxu0 %v493
    %690 = vmatprep.subr.bf16.mxu0 0
    %691 = vmatpush1.bf16.msra.mxu0 %v492
    %692 = vmatprep.subr.bf16.mxu0 0
    %693 = vmatpush2.bf16.msra.mxu0 0
    %694 = vmatprep.subr.bf16.mxu0 0
    %695 = vmatpush2.bf16.msra.mxu0 0
    %696 = vmatprep.subr.bf16.mxu0 0
    %697 = vmatpush2.bf16.msra.mxu0 0
    %698 = vmatprep.subr.bf16.mxu0 0
    %699 = vmatpush2.bf16.msra.mxu0 0
    %700 = vmatprep.subr.bf16.mxu0 0
    %701 = vmatpush2.bf16.msra.mxu0 0
    %702 = vmatprep.subr.bf16.mxu0 0
    %703 = vmatpush2.bf16.msra.mxu0 0
    %704 = vmatprep.subr.bf16.mxu0 0
    %705 = vmatpush2.bf16.msra.mxu0 0
    %706 = vmatprep.subr.bf16.mxu0 0
    %707 = vmatpush2.bf16.msra.mxu0 0
    %708 = vmatprep.mubr.bf16.mxu0 0
    %709 = vmatmul.mubr.bf16.gmra.mxu0 %v100
    %v710 = vpop.f32.mrf.mxu0
    %v711 = vadd.f32 %v671, %v710
    %v712 = vpop.f32.mrf.mxu0
    %v713 = vpop.f32.mrf.mxu0
    %v714 = vpop.f32.mrf.mxu0
    %715 = vdwg.mxu0
    %v716 = vmax.f32 %v711, 0.0
    %v717 = vpack.c.bf16 %v716, %v716
    %v718 = vld [vmem:[%s3] sm:$0xf]
    %v719 = vld [vmem:[%s3 + $0x4] sm:$0xf]
    %v720 = vld [vmem:[%s3 + $0x8] sm:$0xf]
    %v721 = vld [vmem:[%s3 + $0xc] sm:$0xf]
    %v722 = vld [vmem:[%s3 + $0x10] sm:$0xf]
    %v723 = vld [vmem:[%s3 + $0x14] sm:$0xf]
    %v724 = vld [vmem:[%s3 + $0x18] sm:$0xf]
    %v725 = vld [vmem:[%s3 + $0x1c] sm:$0xf]
    %v726 = vld [vmem:[%s3 + $0x20] sm:$0xf]
    %v727 = vld [vmem:[%s3 + $0x24] sm:$0xf]
    %v728 = vld [vmem:[%s3 + $0x28] sm:$0xf]
    %v729 = vld [vmem:[%s3 + $0x2c] sm:$0xf]
    %v730 = vld [vmem:[%s3 + $0x30] sm:$0xf]
    %v731 = vld [vmem:[%s3 + $0x34] sm:$0xf]
    %v732 = vld [vmem:[%s3 + $0x38] sm:$0xf]
    %v733 = vld [vmem:[%s3 + $0x3c] sm:$0xf]
    %v734 = vld [vmem:[%s4] sm:$0x1]
    %v736 = vlaneseq
    %v737 = vshrl.u32 %v736, 7
    %v738 = vsub.s32 0, %v737
    %v739 = vrot.slane %v734, %v738
    %v757 = vunpack.c.l.b16 %v718
    %v758 = vunpack.c.l.b16 %v719
    %v759 = vunpack.c.l.b16 %v720
    %v760 = vunpack.c.l.b16 %v721
    %v761 = vunpack.c.l.b16 %v722
    %v762 = vunpack.c.l.b16 %v723
    %v763 = vunpack.c.l.b16 %v724
    %v764 = vunpack.c.l.b16 %v725
    %v765 = vunpack.c.l.b16 %v726
    %v766 = vunpack.c.l.b16 %v727
    %v767 = vunpack.c.l.b16 %v728
    %v768 = vunpack.c.l.b16 %v729
    %v769 = vunpack.c.l.b16 %v730
    %v770 = vunpack.c.l.b16 %v731
    %v771 = vunpack.c.l.b16 %v732
    %v772 = vunpack.c.l.b16 %v733
    %v773 = vpack.c.b16 %v758, %v757
    %v774 = vpack.c.b16 %v760, %v759
    %v775 = vpack.c.b16 %v762, %v761
    %v776 = vpack.c.b16 %v764, %v763
    %v777 = vpack.c.b16 %v766, %v765
    %v778 = vpack.c.b16 %v768, %v767
    %v779 = vpack.c.b16 %v770, %v769
    %v780 = vpack.c.b16 %v772, %v771
    %789 = vmatprep.subr.bf16.mxu0 0
    %790 = vmatpush1.bf16.msra.mxu0 %v780
    %791 = vmatprep.subr.bf16.mxu0 0
    %792 = vmatpush1.bf16.msra.mxu0 %v779
    %793 = vmatprep.subr.bf16.mxu0 0
    %794 = vmatpush1.bf16.msra.mxu0 %v778
    %795 = vmatprep.subr.bf16.mxu0 0
    %796 = vmatpush1.bf16.msra.mxu0 %v777
    %797 = vmatprep.subr.bf16.mxu0 0
    %798 = vmatpush1.bf16.msra.mxu0 %v776
    %799 = vmatprep.subr.bf16.mxu0 0
    %800 = vmatpush1.bf16.msra.mxu0 %v775
    %801 = vmatprep.subr.bf16.mxu0 0
    %802 = vmatpush1.bf16.msra.mxu0 %v774
    %803 = vmatprep.subr.bf16.mxu0 0
    %804 = vmatpush1.bf16.msra.mxu0 %v773
    %805 = vmatprep.subr.bf16.mxu0 0
    %806 = vmatpush2.bf16.msra.mxu0 0
    %807 = vmatprep.subr.bf16.mxu0 0
    %808 = vmatpush2.bf16.msra.mxu0 0
    %809 = vmatprep.subr.bf16.mxu0 0
    %810 = vmatpush2.bf16.msra.mxu0 0
    %811 = vmatprep.subr.bf16.mxu0 0
    %812 = vmatpush2.bf16.msra.mxu0 0
    %813 = vmatprep.subr.bf16.mxu0 0
    %814 = vmatpush2.bf16.msra.mxu0 0
    %815 = vmatprep.subr.bf16.mxu0 0
    %816 = vmatpush2.bf16.msra.mxu0 0
    %817 = vmatprep.subr.bf16.mxu0 0
    %818 = vmatpush2.bf16.msra.mxu0 0
    %819 = vmatprep.subr.bf16.mxu0 0
    %820 = vmatpush2.bf16.msra.mxu0 0
    %821 = vmatprep.mubr.bf16.mxu0 0
    %822 = vmatmul.mubr.bf16.gmra.mxu0 %v717
    %v823 = vpop.f32.mrf.mxu0
    %v824 = vadd.f32 %v739, %v823
    %v825 = vpop.f32.mrf.mxu0
    %v826 = vpop.f32.mrf.mxu0
    %v827 = vpop.f32.mrf.mxu0
    %828 = vdwg.mxu0
    %v829 = vmax.f32 %v824, 0.0
    %v830 = vpack.c.bf16 %v829, %v829
    %v831 = vld [vmem:[%s5] sm:$0xf]
    %v832 = vld [vmem:[%s5 + $0x4] sm:$0xf]
    %v833 = vld [vmem:[%s5 + $0x8] sm:$0xf]
    %v834 = vld [vmem:[%s5 + $0xc] sm:$0xf]
    %v835 = vld [vmem:[%s5 + $0x10] sm:$0xf]
    %v836 = vld [vmem:[%s5 + $0x14] sm:$0xf]
    %v837 = vld [vmem:[%s5 + $0x18] sm:$0xf]
    %v838 = vld [vmem:[%s5 + $0x1c] sm:$0xf]
    %v839 = vld [vmem:[%s6] sm:$0x1]
    %v841 = vlaneseq
    %v842 = vshrl.u32 %v841, 7
    %v843 = vsub.s32 0, %v842
    %v844 = vrot.slane %v839, %v843
    %v854 = vunpack.c.l.b16 %v831
    %v855 = vunpack.c.l.b16 %v832
    %v856 = vunpack.c.l.b16 %v833
    %v857 = vunpack.c.l.b16 %v834
    %v858 = vunpack.c.l.b16 %v835
    %v859 = vunpack.c.l.b16 %v836
    %v860 = vunpack.c.l.b16 %v837
    %v861 = vunpack.c.l.b16 %v838
    %v862 = vpack.c.b16 %v855, %v854
    %v863 = vpack.c.b16 %v857, %v856
    %v864 = vpack.c.b16 %v859, %v858
    %v865 = vpack.c.b16 %v861, %v860
    %vm870 = vcmask 523264
    %v872 = vsel %vm870, %v830, 0
    %874 = vmatprep.subr.bf16.mxu0 0
    %875 = vmatpush1.bf16.msra.mxu0 0
    %876 = vmatprep.subr.bf16.mxu0 0
    %877 = vmatpush1.bf16.msra.mxu0 0
    %878 = vmatprep.subr.bf16.mxu0 0
    %879 = vmatpush1.bf16.msra.mxu0 0
    %880 = vmatprep.subr.bf16.mxu0 0
    %881 = vmatpush1.bf16.msra.mxu0 0
    %882 = vmatprep.subr.bf16.mxu0 0
    %883 = vmatpush1.bf16.msra.mxu0 %v865
    %884 = vmatprep.subr.bf16.mxu0 0
    %885 = vmatpush1.bf16.msra.mxu0 %v864
    %886 = vmatprep.subr.bf16.mxu0 0
    %887 = vmatpush1.bf16.msra.mxu0 %v863
    %888 = vmatprep.subr.bf16.mxu0 0
    %889 = vmatpush1.bf16.msra.mxu0 %v862
    %890 = vmatprep.subr.bf16.mxu0 0
    %891 = vmatpush2.bf16.msra.mxu0 0
    %892 = vmatprep.subr.bf16.mxu0 0
    %893 = vmatpush2.bf16.msra.mxu0 0
    %894 = vmatprep.subr.bf16.mxu0 0
    %895 = vmatpush2.bf16.msra.mxu0 0
    %896 = vmatprep.subr.bf16.mxu0 0
    %897 = vmatpush2.bf16.msra.mxu0 0
    %898 = vmatprep.subr.bf16.mxu0 0
    %899 = vmatpush2.bf16.msra.mxu0 0
    %900 = vmatprep.subr.bf16.mxu0 0
    %901 = vmatpush2.bf16.msra.mxu0 0
    %902 = vmatprep.subr.bf16.mxu0 0
    %903 = vmatpush2.bf16.msra.mxu0 0
    %904 = vmatprep.subr.bf16.mxu0 0
    %905 = vmatpush2.bf16.msra.mxu0 0
    %906 = vmatprep.mubr.bf16.mxu0 0
    %907 = vmatmul.mubr.bf16.gmra.mxu0 %v872
    %v908 = vpop.f32.mrf.mxu0
    %v909 = vadd.f32 %v844, %v908
    %v910 = vpop.f32.mrf.mxu0
    %v911 = vpop.f32.mrf.mxu0
    %v912 = vpop.f32.mrf.mxu0
    %913 = vdwg.mxu0
    %v914 = vmax.f32 %v909, 0.0
    %v915 = vpack.c.bf16 %v914, %v914
    %v916 = vld [vmem:[%s7] sm:$0xf]
    %v917 = vld [vmem:[%s7 + $0x4] sm:$0x3]
    %v918 = vld [vmem:[%s8] sm:$0x1]
    %v920 = vlaneseq
    %v921 = vshrl.u32 %v920, 7
    %v922 = vsub.s32 0, %v921
    %v923 = vrot.slane %v918, %v922
    %v927 = vunpack.c.l.b16 %v916
    %v928 = vunpack.c.l.b16 %v917
    %v929 = vpack.c.b16 %v928, %v927
    %vm930 = vcmask 97280
    %v932 = vsel %vm930, %v915, 0
    %vm934 = vcmask 1045504
    %v936 = vsel %vm934, %v929, 0
    %938 = vmatprep.subr.bf16.mxu0 0
    %939 = vmatpush1.bf16.msra.mxu0 0
    %940 = vmatprep.subr.bf16.mxu0 0
    %941 = vmatpush1.bf16.msra.mxu0 0
    %942 = vmatprep.subr.bf16.mxu0 0
    %943 = vmatpush1.bf16.msra.mxu0 0
    %944 = vmatprep.subr.bf16.mxu0 0
    %945 = vmatpush1.bf16.msra.mxu0 0
    %946 = vmatprep.subr.bf16.mxu0 0
    %947 = vmatpush1.bf16.msra.mxu0 0
    %948 = vmatprep.subr.bf16.mxu0 0
    %949 = vmatpush1.bf16.msra.mxu0 0
    %950 = vmatprep.subr.bf16.mxu0 0
    %951 = vmatpush1.bf16.msra.mxu0 0
    %952 = vmatprep.subr.bf16.mxu0 0
    %953 = vmatpush1.bf16.msra.mxu0 %v936
    %954 = vmatprep.subr.bf16.mxu0 0
    %955 = vmatpush2.bf16.msra.mxu0 0
    %956 = vmatprep.subr.bf16.mxu0 0
    %957 = vmatpush2.bf16.msra.mxu0 0
    %958 = vmatprep.subr.bf16.mxu0 0
    %959 = vmatpush2.bf16.msra.mxu0 0
    %960 = vmatprep.subr.bf16.mxu0 0
    %961 = vmatpush2.bf16.msra.mxu0 0
    %962 = vmatprep.subr.bf16.mxu0 0
    %963 = vmatpush2.bf16.msra.mxu0 0
    %964 = vmatprep.subr.bf16.mxu0 0
    %965 = vmatpush2.bf16.msra.mxu0 0
    %966 = vmatprep.subr.bf16.mxu0 0
    %967 = vmatpush2.bf16.msra.mxu0 0
    %968 = vmatprep.subr.bf16.mxu0 0
    %969 = vmatpush2.bf16.msra.mxu0 0
    %970 = vmatprep.mubr.bf16.mxu0 0
    %971 = vmatmul.mubr.bf16.gmra.mxu0 %v932
    %v972 = vpop.f32.mrf.mxu0
    %v973 = vadd.f32 %v923, %v972
    %v974 = vpop.f32.mrf.mxu0
    %v975 = vpop.f32.mrf.mxu0
    %v976 = vpop.f32.mrf.mxu0
    %977 = vdwg.mxu0
    %v978 = vpack.c.bf16 %v973, %v973
    %vm979 = vcmask 23552
    %980 = vst.msk [vmem:[%s17] sm:$0xff] %vm979, %v973
    %v981 = vld [vmem:[%s9] sm:$0x3]
    %v982 = vld [vmem:[%s10] sm:$0x1]
    %v984 = vlaneseq
    %v985 = vshrl.u32 %v984, 7
    %v986 = vsub.s32 0, %v985
    %v987 = vrot.slane %v982, %v986
    %v990 = vsel %vm979, %v978, 0
    %vm992 = vcmask 1040384
    %vm993 = vcmask 1041408
    %v994 = vsel %vm992, 4294967295, 65535
    %v995 = vsel %vm993, %v994, 0
    %v997 = vand.u32 %v981, %v995
    %999 = vmatprep.subr.bf16.mxu0 0
    %1000 = vmatpush1.bf16.msra.mxu0 0
    %1001 = vmatprep.subr.bf16.mxu0 0
    %1002 = vmatpush1.bf16.msra.mxu0 0
    %1003 = vmatprep.subr.bf16.mxu0 0
    %1004 = vmatpush1.bf16.msra.mxu0 0
    %1005 = vmatprep.subr.bf16.mxu0 0
    %1006 = vmatpush1.bf16.msra.mxu0 0
    %1007 = vmatprep.subr.bf16.mxu0 0
    %1008 = vmatpush1.bf16.msra.mxu0 0
    %1009 = vmatprep.subr.bf16.mxu0 0
    %1010 = vmatpush1.bf16.msra.mxu0 0
    %1011 = vmatprep.subr.bf16.mxu0 0
    %1012 = vmatpush1.bf16.msra.mxu0 0
    %1013 = vmatprep.subr.bf16.mxu0 0
    %1014 = vmatpush1.bf16.msra.mxu0 %v997
    %1015 = vmatprep.subr.bf16.mxu0 0
    %1016 = vmatpush2.bf16.msra.mxu0 0
    %1017 = vmatprep.subr.bf16.mxu0 0
    %1018 = vmatpush2.bf16.msra.mxu0 0
    %1019 = vmatprep.subr.bf16.mxu0 0
    %1020 = vmatpush2.bf16.msra.mxu0 0
    %1021 = vmatprep.subr.bf16.mxu0 0
    %1022 = vmatpush2.bf16.msra.mxu0 0
    %1023 = vmatprep.subr.bf16.mxu0 0
    %1024 = vmatpush2.bf16.msra.mxu0 0
    %1025 = vmatprep.subr.bf16.mxu0 0
    %1026 = vmatpush2.bf16.msra.mxu0 0
    %1027 = vmatprep.subr.bf16.mxu0 0
    %1028 = vmatpush2.bf16.msra.mxu0 0
    %1029 = vmatprep.subr.bf16.mxu0 0
    %1030 = vmatpush2.bf16.msra.mxu0 0
    %1031 = vmatprep.mubr.bf16.mxu0 0
    %1032 = vmatmul.mubr.bf16.gmra.mxu0 %v990
    %v1033 = vpop.f32.mrf.mxu0
    %v1034 = vadd.f32 %v987, %v1033
    %v1035 = vpop.f32.mrf.mxu0
    %v1036 = vpop.f32.mrf.mxu0
    %v1037 = vpop.f32.mrf.mxu0
    %1038 = vdwg.mxu0
    %v1039 = vmax.f32 %v1034, 0.0
    %v1040 = vpack.c.bf16 %v1039, %v1039
    %v1041 = vld [vmem:[%s11] sm:$0xf]
    %v1042 = vld [vmem:[%s11 + $0x4] sm:$0x3]
    %v1043 = vld [vmem:[%s12] sm:$0x1]
    %v1045 = vlaneseq
    %v1046 = vshrl.u32 %v1045, 7
    %v1047 = vsub.s32 0, %v1046
    %v1048 = vrot.slane %v1043, %v1047
    %v1052 = vunpack.c.l.b16 %v1041
    %v1053 = vunpack.c.l.b16 %v1042
    %v1054 = vpack.c.b16 %v1053, %v1052
    %v1056 = vsel %vm930, %v1040, 0
    %v1059 = vsel %vm934, %v1054, 0
    %1061 = vmatprep.subr.bf16.mxu0 0
    %1062 = vmatpush1.bf16.msra.mxu0 0
    %1063 = vmatprep.subr.bf16.mxu0 0
    %1064 = vmatpush1.bf16.msra.mxu0 0
    %1065 = vmatprep.subr.bf16.mxu0 0
    %1066 = vmatpush1.bf16.msra.mxu0 0
    %1067 = vmatprep.subr.bf16.mxu0 0
    %1068 = vmatpush1.bf16.msra.mxu0 0
    %1069 = vmatprep.subr.bf16.mxu0 0
    %1070 = vmatpush1.bf16.msra.mxu0 0
    %1071 = vmatprep.subr.bf16.mxu0 0
    %1072 = vmatpush1.bf16.msra.mxu0 0
    %1073 = vmatprep.subr.bf16.mxu0 0
    %1074 = vmatpush1.bf16.msra.mxu0 0
    %1075 = vmatprep.subr.bf16.mxu0 0
    %1076 = vmatpush1.bf16.msra.mxu0 %v1059
    %1077 = vmatprep.subr.bf16.mxu0 0
    %1078 = vmatpush2.bf16.msra.mxu0 0
    %1079 = vmatprep.subr.bf16.mxu0 0
    %1080 = vmatpush2.bf16.msra.mxu0 0
    %1081 = vmatprep.subr.bf16.mxu0 0
    %1082 = vmatpush2.bf16.msra.mxu0 0
    %1083 = vmatprep.subr.bf16.mxu0 0
    %1084 = vmatpush2.bf16.msra.mxu0 0
    %1085 = vmatprep.subr.bf16.mxu0 0
    %1086 = vmatpush2.bf16.msra.mxu0 0
    %1087 = vmatprep.subr.bf16.mxu0 0
    %1088 = vmatpush2.bf16.msra.mxu0 0
    %1089 = vmatprep.subr.bf16.mxu0 0
    %1090 = vmatpush2.bf16.msra.mxu0 0
    %1091 = vmatprep.subr.bf16.mxu0 0
    %1092 = vmatpush2.bf16.msra.mxu0 0
    %1093 = vmatprep.mubr.bf16.mxu0 0
    %1094 = vmatmul.mubr.bf16.gmra.mxu0 %v1056
    %v1095 = vpop.f32.mrf.mxu0
    %v1096 = vadd.f32 %v1048, %v1095
    %v1097 = vpop.f32.mrf.mxu0
    %v1098 = vpop.f32.mrf.mxu0
    %v1099 = vpop.f32.mrf.mxu0
    %1100 = vdwg.mxu0
    %v1101 = vmax.f32 %v1096, 0.0
    %v1102 = vpack.c.bf16 %v1101, %v1101
    %v1103 = vld [vmem:[%s13] sm:$0xf]
    %v1104 = vld [vmem:[%s13 + $0x4] sm:$0xf]
    %v1105 = vld [vmem:[%s13 + $0x8] sm:$0xf]
    %v1106 = vld [vmem:[%s13 + $0xc] sm:$0xf]
    %v1107 = vld [vmem:[%s13 + $0x10] sm:$0xf]
    %v1108 = vld [vmem:[%s13 + $0x14] sm:$0xf]
    %v1109 = vld [vmem:[%s13 + $0x18] sm:$0xf]
    %v1110 = vld [vmem:[%s13 + $0x1c] sm:$0xf]
    %v1111 = vld [vmem:[%s14] sm:$0x1]
    %v1113 = vlaneseq
    %v1114 = vshrl.u32 %v1113, 7
    %v1115 = vsub.s32 0, %v1114
    %v1116 = vrot.slane %v1111, %v1115
    %v1126 = vunpack.c.l.b16 %v1103
    %v1127 = vunpack.c.l.b16 %v1104
    %v1128 = vunpack.c.l.b16 %v1105
    %v1129 = vunpack.c.l.b16 %v1106
    %v1130 = vunpack.c.l.b16 %v1107
    %v1131 = vunpack.c.l.b16 %v1108
    %v1132 = vunpack.c.l.b16 %v1109
    %v1133 = vunpack.c.l.b16 %v1110
    %v1134 = vpack.c.b16 %v1127, %v1126
    %v1135 = vpack.c.b16 %v1129, %v1128
    %v1136 = vpack.c.b16 %v1131, %v1130
    %v1137 = vpack.c.b16 %v1133, %v1132
    %v1143 = vsel %vm870, %v1102, 0
    %1145 = vmatprep.subr.bf16.mxu0 0
    %1146 = vmatpush1.bf16.msra.mxu0 0
    %1147 = vmatprep.subr.bf16.mxu0 0
    %1148 = vmatpush1.bf16.msra.mxu0 0
    %1149 = vmatprep.subr.bf16.mxu0 0
    %1150 = vmatpush1.bf16.msra.mxu0 0
    %1151 = vmatprep.subr.bf16.mxu0 0
    %1152 = vmatpush1.bf16.msra.mxu0 0
    %1153 = vmatprep.subr.bf16.mxu0 0
    %1154 = vmatpush1.bf16.msra.mxu0 %v1137
    %1155 = vmatprep.subr.bf16.mxu0 0
    %1156 = vmatpush1.bf16.msra.mxu0 %v1136
    %1157 = vmatprep.subr.bf16.mxu0 0
    %1158 = vmatpush1.bf16.msra.mxu0 %v1135
    %1159 = vmatprep.subr.bf16.mxu0 0
    %1160 = vmatpush1.bf16.msra.mxu0 %v1134
    %1161 = vmatprep.subr.bf16.mxu0 0
    %1162 = vmatpush2.bf16.msra.mxu0 0
    %1163 = vmatprep.subr.bf16.mxu0 0
    %1164 = vmatpush2.bf16.msra.mxu0 0
    %1165 = vmatprep.subr.bf16.mxu0 0
    %1166 = vmatpush2.bf16.msra.mxu0 0
    %1167 = vmatprep.subr.bf16.mxu0 0
    %1168 = vmatpush2.bf16.msra.mxu0 0
    %1169 = vmatprep.subr.bf16.mxu0 0
    %1170 = vmatpush2.bf16.msra.mxu0 0
    %1171 = vmatprep.subr.bf16.mxu0 0
    %1172 = vmatpush2.bf16.msra.mxu0 0
    %1173 = vmatprep.subr.bf16.mxu0 0
    %1174 = vmatpush2.bf16.msra.mxu0 0
    %1175 = vmatprep.subr.bf16.mxu0 0
    %1176 = vmatpush2.bf16.msra.mxu0 0
    %1177 = vmatprep.mubr.bf16.mxu0 0
    %1178 = vmatmul.mubr.bf16.gmra.mxu0 %v1143
    %v1179 = vpop.f32.mrf.mxu0
    %v1180 = vadd.f32 %v1116, %v1179
    %v1181 = vpop.f32.mrf.mxu0
    %v1182 = vpop.f32.mrf.mxu0
    %v1183 = vpop.f32.mrf.mxu0
    %1184 = vdwg.mxu0
    %v1185 = vmax.f32 %v1180, 0.0
    %v1186 = vpack.c.bf16 %v1185, %v1185
    %v1187 = vld [vmem:[#allocation4] sm:$0xff]
    %v1188 = vld [vmem:[#allocation4 + $0x8] sm:$0xff]
    %v1189 = vld [vmem:[#allocation4 + $0x10] sm:$0xff]
    %v1190 = vld [vmem:[#allocation4 + $0x18] sm:$0xf]
    %v1191 = vld [vmem:[#allocation4 + $0x1c] sm:$0xff]
    %v1192 = vld [vmem:[#allocation4 + $0x24] sm:$0xff]
    %v1193 = vld [vmem:[#allocation4 + $0x2c] sm:$0xff]
    %v1194 = vld [vmem:[#allocation4 + $0x34] sm:$0xf]
    %v1195 = vld [vmem:[#allocation4 + $0x38] sm:$0xff]
    %v1196 = vld [vmem:[#allocation4 + $0x40] sm:$0xff]
    %v1197 = vld [vmem:[#allocation4 + $0x48] sm:$0xff]
    %v1198 = vld [vmem:[#allocation4 + $0x50] sm:$0xf]
    %v1199 = vld [vmem:[#allocation4 + $0x54] sm:$0xff]
    %v1200 = vld [vmem:[#allocation4 + $0x5c] sm:$0xff]
    %v1201 = vld [vmem:[#allocation4 + $0x64] sm:$0xff]
    %v1202 = vld [vmem:[#allocation4 + $0x6c] sm:$0xf]
    %v1203 = vld [vmem:[#allocation4 + $0x70] sm:$0xff]
    %v1204 = vld [vmem:[#allocation4 + $0x78] sm:$0xff]
    %v1205 = vld [vmem:[#allocation4 + $0x80] sm:$0xff]
    %v1206 = vld [vmem:[#allocation4 + $0x88] sm:$0xf]
    %v1207 = vld [vmem:[#allocation4 + $0x8c] sm:$0xff]
    %v1208 = vld [vmem:[#allocation4 + $0x94] sm:$0xff]
    %v1209 = vld [vmem:[#allocation4 + $0x9c] sm:$0xff]
    %v1210 = vld [vmem:[#allocation4 + $0xa4] sm:$0xf]
    %v1211 = vld [vmem:[#allocation4 + $0xa8] sm:$0xff]
    %v1212 = vld [vmem:[#allocation4 + $0xb0] sm:$0xff]
    %v1213 = vld [vmem:[#allocation4 + $0xb8] sm:$0xff]
    %v1214 = vld [vmem:[#allocation4 + $0xc0] sm:$0xf]
    %v1215 = vld [vmem:[#allocation4 + $0xc4] sm:$0xff]
    %v1216 = vld [vmem:[#allocation4 + $0xcc] sm:$0xff]
    %v1217 = vld [vmem:[#allocation4 + $0xd4] sm:$0xff]
    %v1218 = vld [vmem:[#allocation4 + $0xdc] sm:$0xf]
    %v1219 = vld [vmem:[#allocation4 + $0xe0] sm:$0xff]
    %v1220 = vld [vmem:[#allocation4 + $0xe8] sm:$0xff]
    %v1221 = vld [vmem:[#allocation4 + $0xf0] sm:$0xff]
    %v1222 = vld [vmem:[#allocation4 + $0xf8] sm:$0xf]
    %v1223 = vld [vmem:[#allocation4 + $0xfc] sm:$0xff]
    %v1224 = vld [vmem:[#allocation4 + $0x104] sm:$0xff]
    %v1225 = vld [vmem:[#allocation4 + $0x10c] sm:$0xff]
    %v1226 = vld [vmem:[#allocation4 + $0x114] sm:$0xf]
    %v1227 = vld [vmem:[#allocation4 + $0x118] sm:$0xff]
    %v1228 = vld [vmem:[#allocation4 + $0x120] sm:$0xff]
    %v1229 = vld [vmem:[#allocation4 + $0x128] sm:$0xff]
    %v1230 = vld [vmem:[#allocation4 + $0x130] sm:$0xf]
    %v1231 = vld [vmem:[#allocation4 + $0x134] sm:$0xff]
    %v1232 = vld [vmem:[#allocation4 + $0x13c] sm:$0xff]
    %v1233 = vld [vmem:[#allocation4 + $0x144] sm:$0xff]
    %v1234 = vld [vmem:[#allocation4 + $0x14c] sm:$0xf]
    %v1235 = vld [vmem:[#allocation4 + $0x150] sm:$0xff]
    %v1236 = vld [vmem:[#allocation4 + $0x158] sm:$0xff]
    %v1237 = vld [vmem:[#allocation4 + $0x160] sm:$0xff]
    %v1238 = vld [vmem:[#allocation4 + $0x168] sm:$0xf]
    %v1239 = vld [vmem:[#allocation4 + $0x16c] sm:$0xff]
    %v1240 = vld [vmem:[#allocation4 + $0x174] sm:$0xff]
    %v1241 = vld [vmem:[#allocation4 + $0x17c] sm:$0xff]
    %v1242 = vld [vmem:[#allocation4 + $0x184] sm:$0xf]
    %v1243 = vld [vmem:[#allocation4 + $0x188] sm:$0xff]
    %v1244 = vld [vmem:[#allocation4 + $0x190] sm:$0xff]
    %v1245 = vld [vmem:[#allocation4 + $0x198] sm:$0xff]
    %v1246 = vld [vmem:[#allocation4 + $0x1a0] sm:$0xf]
    %v1247 = vld [vmem:[#allocation4 + $0x1a4] sm:$0xff]
    %v1248 = vld [vmem:[#allocation4 + $0x1ac] sm:$0xff]
    %v1249 = vld [vmem:[#allocation4 + $0x1b4] sm:$0xff]
    %v1250 = vld [vmem:[#allocation4 + $0x1bc] sm:$0xf]
    %v1251 = vld [vmem:[%s16] sm:$0xff]
    %v1253 = vlaneseq
    %v1254 = vshrl.u32 %v1253, 7
    %v1255 = vsub.s32 0, %v1254
    %v1256 = vrot.slane %v1251, %v1255
    %v1257 = vlaneseq
    %v1258 = vshrl.u32 %v1257, 7
    %v1259 = vsub.s32 1, %v1258
    %v1260 = vrot.slane %v1251, %v1259
    %v1261 = vlaneseq
    %v1262 = vshrl.u32 %v1261, 7
    %v1263 = vsub.s32 2, %v1262
    %v1264 = vrot.slane %v1251, %v1263
    %v1265 = vlaneseq
    %v1266 = vshrl.u32 %v1265, 7
    %v1267 = vsub.s32 3, %v1266
    %v1268 = vrot.slane %v1251, %v1267
    %v1269 = vlaneseq
    %v1270 = vshrl.u32 %v1269, 7
    %v1271 = vsub.s32 4, %v1270
    %v1272 = vrot.slane %v1251, %v1271
    %v1273 = vlaneseq
    %v1274 = vshrl.u32 %v1273, 7
    %v1275 = vsub.s32 5, %v1274
    %v1276 = vrot.slane %v1251, %v1275
    %v1277 = vlaneseq
    %v1278 = vshrl.u32 %v1277, 7
    %v1279 = vsub.s32 6, %v1278
    %v1280 = vrot.slane %v1251, %v1279
    %v1352 = vunpack.c.l.b16 %v1187
    %v1353 = vunpack.c.h.b16 %v1187
    %v1354 = vunpack.c.l.b16 %v1188
    %v1355 = vunpack.c.h.b16 %v1188
    %v1356 = vunpack.c.l.b16 %v1189
    %v1357 = vunpack.c.h.b16 %v1189
    %v1358 = vunpack.c.l.b16 %v1190
    %v1359 = vunpack.c.l.b16 %v1191
    %v1360 = vunpack.c.h.b16 %v1191
    %v1361 = vunpack.c.l.b16 %v1192
    %v1362 = vunpack.c.h.b16 %v1192
    %v1363 = vunpack.c.l.b16 %v1193
    %v1364 = vunpack.c.h.b16 %v1193
    %v1365 = vunpack.c.l.b16 %v1194
    %v1366 = vunpack.c.l.b16 %v1195
    %v1367 = vunpack.c.h.b16 %v1195
    %v1368 = vunpack.c.l.b16 %v1196
    %v1369 = vunpack.c.h.b16 %v1196
    %v1370 = vunpack.c.l.b16 %v1197
    %v1371 = vunpack.c.h.b16 %v1197
    %v1372 = vunpack.c.l.b16 %v1198
    %v1373 = vunpack.c.l.b16 %v1199
    %v1374 = vunpack.c.h.b16 %v1199
    %v1375 = vunpack.c.l.b16 %v1200
    %v1376 = vunpack.c.h.b16 %v1200
    %v1377 = vunpack.c.l.b16 %v1201
    %v1378 = vunpack.c.h.b16 %v1201
    %v1379 = vunpack.c.l.b16 %v1202
    %v1380 = vunpack.c.l.b16 %v1203
    %v1381 = vunpack.c.h.b16 %v1203
    %v1382 = vunpack.c.l.b16 %v1204
    %v1383 = vunpack.c.h.b16 %v1204
    %v1384 = vunpack.c.l.b16 %v1205
    %v1385 = vunpack.c.h.b16 %v1205
    %v1386 = vunpack.c.l.b16 %v1206
    %v1387 = vunpack.c.l.b16 %v1207
    %v1388 = vunpack.c.h.b16 %v1207
    %v1389 = vunpack.c.l.b16 %v1208
    %v1390 = vunpack.c.h.b16 %v1208
    %v1391 = vunpack.c.l.b16 %v1209
    %v1392 = vunpack.c.h.b16 %v1209
    %v1393 = vunpack.c.l.b16 %v1210
    %v1394 = vunpack.c.l.b16 %v1211
    %v1395 = vunpack.c.h.b16 %v1211
    %v1396 = vunpack.c.l.b16 %v1212
    %v1397 = vunpack.c.h.b16 %v1212
    %v1398 = vunpack.c.l.b16 %v1213
    %v1399 = vunpack.c.h.b16 %v1213
    %v1400 = vunpack.c.l.b16 %v1214
    %v1401 = vunpack.c.l.b16 %v1215
    %v1402 = vunpack.c.h.b16 %v1215
    %v1403 = vunpack.c.l.b16 %v1216
    %v1404 = vunpack.c.h.b16 %v1216
    %v1405 = vunpack.c.l.b16 %v1217
    %v1406 = vunpack.c.h.b16 %v1217
    %v1407 = vunpack.c.l.b16 %v1218
    %v1408 = vunpack.c.l.b16 %v1219
    %v1409 = vunpack.c.h.b16 %v1219
    %v1410 = vunpack.c.l.b16 %v1220
    %v1411 = vunpack.c.h.b16 %v1220
    %v1412 = vunpack.c.l.b16 %v1221
    %v1413 = vunpack.c.h.b16 %v1221
    %v1414 = vunpack.c.l.b16 %v1222
    %v1415 = vunpack.c.l.b16 %v1223
    %v1416 = vunpack.c.h.b16 %v1223
    %v1417 = vunpack.c.l.b16 %v1224
    %v1418 = vunpack.c.h.b16 %v1224
    %v1419 = vunpack.c.l.b16 %v1225
    %v1420 = vunpack.c.h.b16 %v1225
    %v1421 = vunpack.c.l.b16 %v1226
    %v1422 = vunpack.c.l.b16 %v1227
    %v1423 = vunpack.c.h.b16 %v1227
    %v1424 = vunpack.c.l.b16 %v1228
    %v1425 = vunpack.c.h.b16 %v1228
    %v1426 = vunpack.c.l.b16 %v1229
    %v1427 = vunpack.c.h.b16 %v1229
    %v1428 = vunpack.c.l.b16 %v1230
    %v1429 = vunpack.c.l.b16 %v1231
    %v1430 = vunpack.c.h.b16 %v1231
    %v1431 = vunpack.c.l.b16 %v1232
    %v1432 = vunpack.c.h.b16 %v1232
    %v1433 = vunpack.c.l.b16 %v1233
    %v1434 = vunpack.c.h.b16 %v1233
    %v1435 = vunpack.c.l.b16 %v1234
    %v1436 = vunpack.c.l.b16 %v1235
    %v1437 = vunpack.c.h.b16 %v1235
    %v1438 = vunpack.c.l.b16 %v1236
    %v1439 = vunpack.c.h.b16 %v1236
    %v1440 = vunpack.c.l.b16 %v1237
    %v1441 = vunpack.c.h.b16 %v1237
    %v1442 = vunpack.c.l.b16 %v1238
    %v1443 = vunpack.c.l.b16 %v1239
    %v1444 = vunpack.c.h.b16 %v1239
    %v1445 = vunpack.c.l.b16 %v1240
    %v1446 = vunpack.c.h.b16 %v1240
    %v1447 = vunpack.c.l.b16 %v1241
    %v1448 = vunpack.c.h.b16 %v1241
    %v1449 = vunpack.c.l.b16 %v1242
    %v1450 = vunpack.c.l.b16 %v1243
    %v1451 = vunpack.c.h.b16 %v1243
    %v1452 = vunpack.c.l.b16 %v1244
    %v1453 = vunpack.c.h.b16 %v1244
    %v1454 = vunpack.c.l.b16 %v1245
    %v1455 = vunpack.c.h.b16 %v1245
    %v1456 = vunpack.c.l.b16 %v1246
    %v1457 = vunpack.c.l.b16 %v1247
    %v1458 = vunpack.c.h.b16 %v1247
    %v1459 = vunpack.c.l.b16 %v1248
    %v1460 = vunpack.c.h.b16 %v1248
    %v1461 = vunpack.c.l.b16 %v1249
    %v1462 = vunpack.c.h.b16 %v1249
    %v1463 = vunpack.c.l.b16 %v1250
    %v1464 = vpack.c.b16 %v1359, %v1352
    %v1465 = vpack.c.b16 %v1360, %v1353
    %v1466 = vpack.c.b16 %v1361, %v1354
    %v1467 = vpack.c.b16 %v1362, %v1355
    %v1468 = vpack.c.b16 %v1363, %v1356
    %v1469 = vpack.c.b16 %v1364, %v1357
    %v1470 = vpack.c.b16 %v1365, %v1358
    %v1471 = vpack.c.b16 %v1373, %v1366
    %v1472 = vpack.c.b16 %v1374, %v1367
    %v1473 = vpack.c.b16 %v1375, %v1368
    %v1474 = vpack.c.b16 %v1376, %v1369
    %v1475 = vpack.c.b16 %v1377, %v1370
    %v1476 = vpack.c.b16 %v1378, %v1371
    %v1477 = vpack.c.b16 %v1379, %v1372
    %v1478 = vpack.c.b16 %v1387, %v1380
    %v1479 = vpack.c.b16 %v1388, %v1381
    %v1480 = vpack.c.b16 %v1389, %v1382
    %v1481 = vpack.c.b16 %v1390, %v1383
    %v1482 = vpack.c.b16 %v1391, %v1384
    %v1483 = vpack.c.b16 %v1392, %v1385
    %v1484 = vpack.c.b16 %v1393, %v1386
    %v1485 = vpack.c.b16 %v1401, %v1394
    %v1486 = vpack.c.b16 %v1402, %v1395
    %v1487 = vpack.c.b16 %v1403, %v1396
    %v1488 = vpack.c.b16 %v1404, %v1397
    %v1489 = vpack.c.b16 %v1405, %v1398
    %v1490 = vpack.c.b16 %v1406, %v1399
    %v1491 = vpack.c.b16 %v1407, %v1400
    %v1492 = vpack.c.b16 %v1415, %v1408
    %v1493 = vpack.c.b16 %v1416, %v1409
    %v1494 = vpack.c.b16 %v1417, %v1410
    %v1495 = vpack.c.b16 %v1418, %v1411
    %v1496 = vpack.c.b16 %v1419, %v1412
    %v1497 = vpack.c.b16 %v1420, %v1413
    %v1498 = vpack.c.b16 %v1421, %v1414
    %v1499 = vpack.c.b16 %v1429, %v1422
    %v1500 = vpack.c.b16 %v1430, %v1423
    %v1501 = vpack.c.b16 %v1431, %v1424
    %v1502 = vpack.c.b16 %v1432, %v1425
    %v1503 = vpack.c.b16 %v1433, %v1426
    %v1504 = vpack.c.b16 %v1434, %v1427
    %v1505 = vpack.c.b16 %v1435, %v1428
    %v1506 = vpack.c.b16 %v1443, %v1436
    %v1507 = vpack.c.b16 %v1444, %v1437
    %v1508 = vpack.c.b16 %v1445, %v1438
    %v1509 = vpack.c.b16 %v1446, %v1439
    %v1510 = vpack.c.b16 %v1447, %v1440
    %v1511 = vpack.c.b16 %v1448, %v1441
    %v1512 = vpack.c.b16 %v1449, %v1442
    %v1513 = vpack.c.b16 %v1457, %v1450
    %v1514 = vpack.c.b16 %v1458, %v1451
    %v1515 = vpack.c.b16 %v1459, %v1452
    %v1516 = vpack.c.b16 %v1460, %v1453
    %v1517 = vpack.c.b16 %v1461, %v1454
    %v1518 = vpack.c.b16 %v1462, %v1455
    %v1519 = vpack.c.b16 %v1463, %v1456
    %1576 = vmatprep.subr.bf16.mxu0 %v1514
    %1577 = vmatpush1.bf16.msra.mxu0 %v1513
    %1578 = vmatprep.subr.bf16.mxu0 %v1507
    %1579 = vmatpush1.bf16.msra.mxu0 %v1506
    %1580 = vmatprep.subr.bf16.mxu0 %v1500
    %1581 = vmatpush1.bf16.msra.mxu0 %v1499
    %1582 = vmatprep.subr.bf16.mxu0 %v1493
    %1583 = vmatpush1.bf16.msra.mxu0 %v1492
    %1584 = vmatprep.subr.bf16.mxu0 %v1486
    %1585 = vmatpush1.bf16.msra.mxu0 %v1485
    %1586 = vmatprep.subr.bf16.mxu0 %v1479
    %1587 = vmatpush1.bf16.msra.mxu0 %v1478
    %1588 = vmatprep.subr.bf16.mxu0 %v1472
    %1589 = vmatpush1.bf16.msra.mxu0 %v1471
    %1590 = vmatprep.subr.bf16.mxu0 %v1465
    %1591 = vmatpush1.bf16.msra.mxu0 %v1464
    %1592 = vmatprep.subr.bf16.mxu0 0
    %1593 = vmatpush2.bf16.msra.mxu0 0
    %1594 = vmatprep.subr.bf16.mxu0 0
    %1595 = vmatpush2.bf16.msra.mxu0 0
    %1596 = vmatprep.subr.bf16.mxu0 0
    %1597 = vmatpush2.bf16.msra.mxu0 0
    %1598 = vmatprep.subr.bf16.mxu0 0
    %1599 = vmatpush2.bf16.msra.mxu0 0
    %1600 = vmatprep.subr.bf16.mxu0 0
    %1601 = vmatpush2.bf16.msra.mxu0 0
    %1602 = vmatprep.subr.bf16.mxu0 0
    %1603 = vmatpush2.bf16.msra.mxu0 0
    %1604 = vmatprep.subr.bf16.mxu0 0
    %1605 = vmatpush2.bf16.msra.mxu0 0
    %1606 = vmatprep.subr.bf16.mxu0 0
    %1607 = vmatpush2.bf16.msra.mxu0 0
    %1608 = vmatprep.mubr.bf16.mxu0 0
    %1609 = vmatmul.mubr.bf16.gmra.mxu0 %v1186
    %v1610 = vpop.f32.mrf.mxu0
    %v1611 = vadd.f32 %v1256, %v1610
    %v1612 = vpop.f32.mrf.mxu0
    %v1613 = vadd.f32 %v1260, %v1612
    %v1614 = vpop.f32.mrf.mxu0
    %v1615 = vpop.f32.mrf.mxu0
    %1616 = vdwg.mxu0
    %1617 = vmatprep.subr.bf16.mxu0 %v1516
    %1618 = vmatpush1.bf16.msra.mxu0 %v1515
    %1619 = vmatprep.subr.bf16.mxu0 %v1509
    %1620 = vmatpush1.bf16.msra.mxu0 %v1508
    %1621 = vmatprep.subr.bf16.mxu0 %v1502
    %1622 = vmatpush1.bf16.msra.mxu0 %v1501
    %1623 = vmatprep.subr.bf16.mxu0 %v1495
    %1624 = vmatpush1.bf16.msra.mxu0 %v1494
    %1625 = vmatprep.subr.bf16.mxu0 %v1488
    %1626 = vmatpush1.bf16.msra.mxu0 %v1487
    %1627 = vmatprep.subr.bf16.mxu0 %v1481
    %1628 = vmatpush1.bf16.msra.mxu0 %v1480
    %1629 = vmatprep.subr.bf16.mxu0 %v1474
    %1630 = vmatpush1.bf16.msra.mxu0 %v1473
    %1631 = vmatprep.subr.bf16.mxu0 %v1467
    %1632 = vmatpush1.bf16.msra.mxu0 %v1466
    %1633 = vmatprep.subr.bf16.mxu0 0
    %1634 = vmatpush2.bf16.msra.mxu0 0
    %1635 = vmatprep.subr.bf16.mxu0 0
    %1636 = vmatpush2.bf16.msra.mxu0 0
    %1637 = vmatprep.subr.bf16.mxu0 0
    %1638 = vmatpush2.bf16.msra.mxu0 0
    %1639 = vmatprep.subr.bf16.mxu0 0
    %1640 = vmatpush2.bf16.msra.mxu0 0
    %1641 = vmatprep.subr.bf16.mxu0 0
    %1642 = vmatpush2.bf16.msra.mxu0 0
    %1643 = vmatprep.subr.bf16.mxu0 0
    %1644 = vmatpush2.bf16.msra.mxu0 0
    %1645 = vmatprep.subr.bf16.mxu0 0
    %1646 = vmatpush2.bf16.msra.mxu0 0
    %1647 = vmatprep.subr.bf16.mxu0 0
    %1648 = vmatpush2.bf16.msra.mxu0 0
    %1649 = vmatprep.mubr.bf16.mxu0 0
    %1650 = vmatmul.mubr.bf16.gmra.mxu0 %v1186
    %v1651 = vpop.f32.mrf.mxu0
    %v1652 = vadd.f32 %v1264, %v1651
    %v1653 = vpop.f32.mrf.mxu0
    %v1654 = vadd.f32 %v1268, %v1653
    %v1655 = vpop.f32.mrf.mxu0
    %v1656 = vpop.f32.mrf.mxu0
    %1657 = vdwg.mxu0
    %1658 = vmatprep.subr.bf16.mxu0 %v1518
    %1659 = vmatpush1.bf16.msra.mxu0 %v1517
    %1660 = vmatprep.subr.bf16.mxu0 %v1511
    %1661 = vmatpush1.bf16.msra.mxu0 %v1510
    %1662 = vmatprep.subr.bf16.mxu0 %v1504
    %1663 = vmatpush1.bf16.msra.mxu0 %v1503
    %1664 = vmatprep.subr.bf16.mxu0 %v1497
    %1665 = vmatpush1.bf16.msra.mxu0 %v1496
    %1666 = vmatprep.subr.bf16.mxu0 %v1490
    %1667 = vmatpush1.bf16.msra.mxu0 %v1489
    %1668 = vmatprep.subr.bf16.mxu0 %v1483
    %1669 = vmatpush1.bf16.msra.mxu0 %v1482
    %1670 = vmatprep.subr.bf16.mxu0 %v1476
    %1671 = vmatpush1.bf16.msra.mxu0 %v1475
    %1672 = vmatprep.subr.bf16.mxu0 %v1469
    %1673 = vmatpush1.bf16.msra.mxu0 %v1468
    %1674 = vmatprep.subr.bf16.mxu0 0
    %1675 = vmatpush2.bf16.msra.mxu0 0
    %1676 = vmatprep.subr.bf16.mxu0 0
    %1677 = vmatpush2.bf16.msra.mxu0 0
    %1678 = vmatprep.subr.bf16.mxu0 0
    %1679 = vmatpush2.bf16.msra.mxu0 0
    %1680 = vmatprep.subr.bf16.mxu0 0
    %1681 = vmatpush2.bf16.msra.mxu0 0
    %1682 = vmatprep.subr.bf16.mxu0 0
    %1683 = vmatpush2.bf16.msra.mxu0 0
    %1684 = vmatprep.subr.bf16.mxu0 0
    %1685 = vmatpush2.bf16.msra.mxu0 0
    %1686 = vmatprep.subr.bf16.mxu0 0
    %1687 = vmatpush2.bf16.msra.mxu0 0
    %1688 = vmatprep.subr.bf16.mxu0 0
    %1689 = vmatpush2.bf16.msra.mxu0 0
    %1690 = vmatprep.mubr.bf16.mxu0 0
    %1691 = vmatmul.mubr.bf16.gmra.mxu0 %v1186
    %v1692 = vpop.f32.mrf.mxu0
    %v1693 = vadd.f32 %v1272, %v1692
    %v1694 = vpop.f32.mrf.mxu0
    %v1695 = vadd.f32 %v1276, %v1694
    %v1696 = vpop.f32.mrf.mxu0
    %v1697 = vpop.f32.mrf.mxu0
    %1698 = vdwg.mxu0
    %1699 = vmatprep.subr.bf16.mxu0 0
    %1700 = vmatpush1.bf16.msra.mxu0 %v1519
    %1701 = vmatprep.subr.bf16.mxu0 0
    %1702 = vmatpush1.bf16.msra.mxu0 %v1512
    %1703 = vmatprep.subr.bf16.mxu0 0
    %1704 = vmatpush1.bf16.msra.mxu0 %v1505
    %1705 = vmatprep.subr.bf16.mxu0 0
    %1706 = vmatpush1.bf16.msra.mxu0 %v1498
    %1707 = vmatprep.subr.bf16.mxu0 0
    %1708 = vmatpush1.bf16.msra.mxu0 %v1491
    %1709 = vmatprep.subr.bf16.mxu0 0
    %1710 = vmatpush1.bf16.msra.mxu0 %v1484
    %1711 = vmatprep.subr.bf16.mxu0 0
    %1712 = vmatpush1.bf16.msra.mxu0 %v1477
    %1713 = vmatprep.subr.bf16.mxu0 0
    %1714 = vmatpush1.bf16.msra.mxu0 %v1470
    %1715 = vmatprep.subr.bf16.mxu0 0
    %1716 = vmatpush2.bf16.msra.mxu0 0
    %1717 = vmatprep.subr.bf16.mxu0 0
    %1718 = vmatpush2.bf16.msra.mxu0 0
    %1719 = vmatprep.subr.bf16.mxu0 0
    %1720 = vmatpush2.bf16.msra.mxu0 0
    %1721 = vmatprep.subr.bf16.mxu0 0
    %1722 = vmatpush2.bf16.msra.mxu0 0
    %1723 = vmatprep.subr.bf16.mxu0 0
    %1724 = vmatpush2.bf16.msra.mxu0 0
    %1725 = vmatprep.subr.bf16.mxu0 0
    %1726 = vmatpush2.bf16.msra.mxu0 0
    %1727 = vmatprep.subr.bf16.mxu0 0
    %1728 = vmatpush2.bf16.msra.mxu0 0
    %1729 = vmatprep.subr.bf16.mxu0 0
    %1730 = vmatpush2.bf16.msra.mxu0 0
    %1731 = vmatprep.mubr.bf16.mxu0 0
    %1732 = vmatmul.mubr.bf16.gmra.mxu0 %v1186
    %v1733 = vpop.f32.mrf.mxu0
    %v1734 = vadd.f32 %v1280, %v1733
    %v1735 = vpop.f32.mrf.mxu0
    %v1736 = vpop.f32.mrf.mxu0
    %v1737 = vpop.f32.mrf.mxu0
    %1738 = vdwg.mxu0
    %v1739 = vtanh.pop %v1611
    %v1740 = vtanh.pop %v1613
    %v1741 = vtanh.pop %v1652
    %v1742 = vtanh.pop %v1654
    %v1743 = vtanh.pop %v1693
    %v1744 = vtanh.pop %v1695
    %v1745 = vtanh.pop %v1734
    %1746 = vst [vmem:[%s18] sm:$0xff] %v1739
    %1747 = vst [vmem:[%s18 + $0x8] sm:$0xff] %v1740
    %1748 = vst [vmem:[%s18 + $0x10] sm:$0xff] %v1741
    %1749 = vst [vmem:[%s18 + $0x18] sm:$0xff] %v1742
    %1750 = vst [vmem:[%s18 + $0x20] sm:$0xff] %v1743
    %1751 = vst [vmem:[%s18 + $0x28] sm:$0xff] %v1744
    %1752 = vst [vmem:[%s18 + $0x30] sm:$0xff] %v1745
    // Predicated region
    $region78: #{autoencoder_forward.1} parent=1 // pred_check
      _
    $region79: #{autoencoder_forward.1} parent=1 // pred_check_branch
      %1754 = sbr.rel (0) target = $region81
    $region80: #{autoencoder_forward.1} parent=1 // pred_region
      _
    $region81: #{autoencoder_forward.1} parent=1 // pred_fallthru
      _
    // Predicated region
    $region82: #{autoencoder_forward.1} parent=1 // pred_check
      _
    $region83: #{autoencoder_forward.1} parent=1 // pred_check_branch
      %1756 = sbr.rel (0) target = $region85
    $region84: #{autoencoder_forward.1} parent=1 // pred_region
      _
    $region85: #{autoencoder_forward.1} parent=1 // pred_fallthru
      _
    // Predicated region
    $region86: #{autoencoder_forward.1} parent=1 // pred_check
      _
    $region87: #{autoencoder_forward.1} parent=1 // pred_check_branch
      %1758 = sbr.rel (0) target = $region89
    $region88: #{autoencoder_forward.1} parent=1 // pred_region
      _
    $region89: #{autoencoder_forward.1} parent=1 // pred_fallthru
      _
    // Predicated region
    $region90: #{autoencoder_forward.1} parent=1 // pred_check
      _
    $region91: #{autoencoder_forward.1} parent=1 // pred_check_branch
      %1760 = sbr.rel (0) target = $region93
    $region92: #{autoencoder_forward.1} parent=1 // pred_region
      _
    $region93: #{autoencoder_forward.1} parent=1 // pred_fallthru
      _
    %1761 = vsyncpa [#allocation3], 1
    %1762 = vsyncpa [#allocation5], 1

</llo_original>
